<compile_context>
chip_gen: v6e
topology: v6e:2x2x1
jax: 0.10.0
libtpu: 0.0.40
codegen_flags: <defaults>
</compile_context>

<pallas_src>
import math

import jax
import jax.numpy as jnp
import numpy as np
from jax.experimental import pallas as pl
from jax.experimental.pallas import tpu as pltpu

# ----------------------------- configuration --------------------------------
B, S, D = 2, 8, 32                 # batch, sequence, embedding_dim
BS = B * S                         # folded batch*sequence rows
PROJ_FACTOR = 2.0
D_INNER = int(PROJ_FACTOR * D)     # 64  (mlstm inner dim)
CONV_K = 4                         # conv1d_kernel_size
QKV_BLOCK = 4                      # qkv_proj_blocksize
NUM_PROJ_HEADS = D_INNER // QKV_BLOCK   # 16 headwise-linear heads
NH = 4                             # mlstm num_heads
DH = D_INNER // NH                 # 16 head dim
NHBS = NH * BS                     # 64 stacked (head, token) rows
D_FF = 64                          # feedforward up dim
LN_EPS = 1e-5
GN_EPS = 1e-5
BACKEND_EPS = 1e-6
NEG_INF = -1e30

# packed-constant row offsets (see prepare_params)
C16_TRIL = 0                        # (BS, BS)     block-causal 0/1
C16_ADDMASK = C16_TRIL + BS         # (NHBS, BS)   additive causal mask (0 / -1e30)
C16_PEXP = C16_ADDMASK + NHBS       # (NHBS, BS)   token expansion matrix P
C16_HSEL = C16_PEXP + NHBS          # (NHBS, NH)   one-hot head selector (first NH lanes)
C16_ROWS = C16_HSEL + NHBS          # 208

C64_HEADMASK = 0                    # (NHBS, D_INNER) lane mask per stacked head
C64_CONVW = C64_HEADMASK + NHBS     # (3*BS, D_INNER) (valid-mask * conv tap) per shift
C64_VEC = C64_CONVW + 3 * BS        # packed small vectors, 8 rows
C64_ROWS = C64_VEC + 8              # 120
VROW_WCLAST = C64_VEC + 0           # conv tap for shift 0
VROW_BCONV = C64_VEC + 1
VROW_WON = C64_VEC + 2              # 1 + w_on
VROW_SKIP = C64_VEC + 3
VROW_BIF = C64_VEC + 4              # [bi | bf] in the first 2*NH lanes


# ------------------------------ kernel helpers -------------------------------
def _layernorm(x, eps):
    # xlstm LayerNorm (weight=True, bias=False); the (1 + w) residual weight is
    # folded into the following matmul's rows at param-prep time.
    mu = jnp.mean(x, axis=-1, keepdims=True)
    xc = x - mu
    var = jnp.mean(xc * xc, axis=-1, keepdims=True)
    return xc * jax.lax.rsqrt(var + eps)


def _silu(x):
    return x * jax.nn.sigmoid(x)


def _log_sigmoid(x):
    return jnp.minimum(x, 0.0) - jnp.log(1.0 + jnp.exp(-jnp.abs(x)))


def _gelu_tanh(x):
    # tanh-approximate GELU (EUP tanh); intentional approximation vs exact erf.
    c = math.sqrt(2.0 / math.pi)
    return 0.5 * x * (1.0 + jnp.tanh(c * (x + 0.044715 * x * x * x)))


# --------------------------------- kernel ------------------------------------
def xlstm_block_kernel(x_ref, c16_ref, c64_ref, w_up_ref, w_qk_ref, wv_ref,
                       w_down_ref, w_ffu_ref, w_ffd_ref, out_ref):
    f32 = jnp.float32
    x = x_ref[...]                                             # (BS, D), batch folded

    # ---- packed constants (static ref views; no in-kernel iota/mask building) ----
    tril_f = c16_ref[C16_TRIL:C16_TRIL + BS, :]                # (BS, BS)
    addmask = c16_ref[C16_ADDMASK:C16_ADDMASK + NHBS, :]       # (NHBS, BS)
    p_exp = c16_ref[C16_PEXP:C16_PEXP + NHBS, :]               # (NHBS, BS)
    h_sel = c16_ref[C16_HSEL:C16_HSEL + NHBS, 0:NH]            # (NHBS, NH)

    head_mask = c64_ref[C64_HEADMASK:C64_HEADMASK + NHBS, :]   # (NHBS, Di)
    wc_last = c64_ref[VROW_WCLAST:VROW_WCLAST + 1, :]          # (1, Di)
    b_conv = c64_ref[VROW_BCONV:VROW_BCONV + 1, :]             # (1, Di)
    w_on_scale = c64_ref[VROW_WON:VROW_WON + 1, :]             # (1, Di)  = 1 + w_on
    skip_w = c64_ref[VROW_SKIP:VROW_SKIP + 1, :]               # (1, Di)
    b_if = c64_ref[VROW_BIF:VROW_BIF + 1, 0:2 * NH]            # (1, 2*NH)

    # ---------------- mLSTM branch (pre-norm residual) -----------------------
    xn = _layernorm(x, LN_EPS)                                 # LN weight folded into w_up
    x_inner = jnp.dot(xn, w_up_ref[...], preferred_element_type=f32)   # (BS, 2*Di)
    x_mlstm = x_inner[:, :D_INNER]
    z = x_inner[:, D_INNER:]

    # causal depthwise conv1d: XLU sublane rolls + precomputed (valid * tap) constants.
    # cross-batch / wraparound leakage is killed by the precomputed masks.
    conv = x_mlstm * wc_last + b_conv
    for shift in range(1, CONV_K):
        cw = c64_ref[C64_CONVW + (shift - 1) * BS:C64_CONVW + shift * BS, :]
        conv = conv + pltpu.roll(x_mlstm, shift=shift, axis=0) * cw
    x_conv_act = _silu(conv)                                   # (BS, Di)

    # fused lane-dense projections:
    #   [q | k/sqrt(DH) | ifgate(qk-part)] in one matmul, [v | ifgate(v-part)] in another.
    qk_full = jnp.dot(x_conv_act, w_qk_ref[...], preferred_element_type=f32)  # (BS, 2Di+2NH)
    v_full = jnp.dot(x_mlstm, wv_ref[...], preferred_element_type=f32)        # (BS, Di+2NH)
    q = qk_full[:, :D_INNER]
    k_ = qk_full[:, D_INNER:2 * D_INNER]                       # already scaled by 1/sqrt(DH)
    v = v_full[:, :D_INNER]
    if_pre = qk_full[:, 2 * D_INNER:] + v_full[:, D_INNER:] + b_if            # (BS, 2*NH)
    ig = if_pre[:, :NH]
    fg = if_pre[:, NH:]

    # inclusive per-batch cumsum of log-forget-gates via block-causal matmul
    log_fg = _log_sigmoid(fg)                                  # (BS, NH)
    lf_cum = jnp.dot(tril_f, log_fg, preferred_element_type=f32)   # (BS, NH)

    # ---- parallel stabilized mLSTM backend, all heads stacked on sublanes ----
    # stacked row index R = h*BS + i (head h, query token i); columns j = keys.
    # stacking built from constant 0/1 selection matrices (MXU) - no concats/transposes.
    g = ig - lf_cum                                            # (BS, NH)
    a_col = jnp.sum(jnp.dot(p_exp, lf_cum, preferred_element_type=f32) * h_sel,
                    axis=-1, keepdims=True)                    # (NHBS, 1): lf_cum[i, h]
    b_sub = jax.lax.dot_general(h_sel, g, (((1,), (1,)), ((), ())),
                                preferred_element_type=f32)    # (NHBS, BS): g[j, h]
    log_d = a_col + b_sub + addmask                            # additive causal mask
    max_log_d = jnp.max(log_d, axis=-1, keepdims=True)
    d_mat = jnp.exp(log_d - max_log_d)

    q_stack = jnp.dot(p_exp, q, preferred_element_type=f32) * head_mask       # (NHBS, Di)
    qk = jax.lax.dot_general(q_stack, k_, (((1,), (1,)), ((), ())),
                             preferred_element_type=f32)       # (NHBS, BS)
    c_mat = qk * d_mat
    normalizer = jnp.maximum(jnp.abs(jnp.sum(c_mat, axis=-1, keepdims=True)),
                             jnp.exp(-max_log_d))
    c_norm = c_mat * pl.reciprocal(normalizer + BACKEND_EPS, approx=True)
    h_sub = jnp.dot(c_norm, v, preferred_element_type=f32)     # (NHBS, Di)

    # per-head GroupNorm (MultiHeadLayerNorm) for all heads at once.
    h_heads = h_sub * head_mask
    mu = jnp.sum(h_heads, axis=-1, keepdims=True) * (1.0 / DH)
    hc = (h_heads - mu) * head_mask
    var = jnp.sum(hc * hc, axis=-1, keepdims=True) * (1.0 / DH)
    h_gn = hc * jax.lax.rsqrt(var + GN_EPS)

    # fold the NH sublane blocks back to (BS, Di): head lane-blocks are disjoint,
    # so summing the aligned 16-row slices places each head in its lanes.
    h_tilde = h_gn[0:BS]
    for h in range(1, NH):
        h_tilde = h_tilde + h_gn[h * BS:(h + 1) * BS]
    h_tilde = h_tilde * w_on_scale

    h_skip = h_tilde + skip_w * x_conv_act
    h_state = h_skip * _silu(z)
    y_mlstm = jnp.dot(h_state, w_down_ref[...], preferred_element_type=f32)   # (BS, D)
    x1 = x + y_mlstm

    # ---------------- gated feedforward branch (pre-norm residual) -----------
    x1n = _layernorm(x1, LN_EPS)                               # LN weight folded into w_ffu
    ff = jnp.dot(x1n, w_ffu_ref[...], preferred_element_type=f32)             # (BS, 2*Dff)
    gate = ff[:, :D_FF]
    up = ff[:, D_FF:]
    y_ffn = jnp.dot(_gelu_tanh(gate) * up, w_ffd_ref[...], preferred_element_type=f32)

    out_ref[...] = x1 + y_ffn


# ------------------------ one-time parameter preparation ---------------------
def prepare_params(params):
    """One-time (off the hot path) weight fusion + constant precomputation."""
    (ln1_w, w_up, w_conv, b_conv, wq, wk, wv, wi, bi, wf, bf,
     w_on, skip, w_down, ln2_w, w_ffu, w_ffd) = params
    hp = jax.lax.Precision.HIGHEST
    inv_sqrt_dh = 1.0 / math.sqrt(DH)

    # LayerNorm residual weights folded into the following matmul rows.
    w_up_s = w_up * (1.0 + ln1_w).reshape(D, 1)
    w_ffu_s = w_ffu * (1.0 + ln2_w).reshape(D, 1)

    # i/f-gate projections folded into the q/k and v matmuls as extra columns.
    w_qk = jnp.concatenate([wq, wk], axis=1)                              # (Di, 2Di)
    w_if_qk = jnp.concatenate([wi[:2 * D_INNER], wf[:2 * D_INNER]], 1)    # (2Di, 2NH)
    w_if_v = jnp.concatenate([wi[2 * D_INNER:], wf[2 * D_INNER:]], 1)     # (Di, 2NH)
    if_cols_qk = jnp.dot(w_qk, w_if_qk, precision=hp)                     # (Di, 2NH)
    if_cols_v = jnp.dot(wv, w_if_v, precision=hp)                         # (Di, 2NH)
    w_qk_plus = jnp.concatenate([wq, wk * inv_sqrt_dh, if_cols_qk], axis=1)  # (Di, 2Di+2NH)
    wv_plus = jnp.concatenate([wv, if_cols_v], axis=1)                    # (Di, Di+2NH)
    b_if = jnp.concatenate([bi, bf], axis=1)                              # (1, 2NH)

    # ---- packed constants: 16-lane group ----
    r = np.arange(BS)
    same_b = (r[:, None] // S) == (r[None, :] // S)
    tril = (same_b & (r[:, None] >= r[None, :])).astype(np.float32)      # (BS, BS)

    R = np.arange(NHBS)
    i_of_r = R % BS
    h_of_r = R // BS
    valid_sub = ((i_of_r[:, None] // S) == (r[None, :] // S)) & (i_of_r[:, None] >= r[None, :])
    addmask = np.where(valid_sub, 0.0, NEG_INF).astype(np.float32)       # (NHBS, BS)
    p_exp = (i_of_r[:, None] == r[None, :]).astype(np.float32)           # (NHBS, BS)
    h_sel = np.zeros((NHBS, BS), np.float32)                             # one-hot head in lanes 0:NH
    h_sel[R, h_of_r] = 1.0

    const16 = np.zeros((C16_ROWS, BS), np.float32)
    const16[C16_TRIL:C16_TRIL + BS] = tril
    const16[C16_ADDMASK:C16_ADDMASK + NHBS] = addmask
    const16[C16_PEXP:C16_PEXP + NHBS] = p_exp
    const16[C16_HSEL:C16_HSEL + NHBS] = h_sel

    # ---- packed constants: 64-lane group ----
    d = np.arange(D_INNER)
    head_mask = (h_of_r[:, None] == (d[None, :] // DH)).astype(np.float32)   # (NHBS, Di)

    w_conv_np = np.asarray(w_conv, np.float32)
    pos = r % S
    convw = np.zeros((3 * BS, D_INNER), np.float32)
    for shift in range(1, CONV_K):
        tap = CONV_K - 1 - shift
        valid = (pos >= shift).astype(np.float32)[:, None]
        convw[(shift - 1) * BS:shift * BS] = valid * w_conv_np[tap][None, :]

    vec = np.zeros((8, D_INNER), np.float32)
    vec[0] = w_conv_np[CONV_K - 1]
    vec[1] = np.asarray(b_conv, np.float32)[0]
    vec[2] = 1.0 + np.asarray(w_on, np.float32)[0]
    vec[3] = np.asarray(skip, np.float32)[0]
    vec[4, :2 * NH] = np.asarray(b_if, np.float32)[0]

    const64 = np.concatenate([head_mask, convw, vec], axis=0)            # (C64_ROWS, Di)
    assert const64.shape[0] == C64_ROWS

    return (jnp.asarray(const16), jnp.asarray(const64), w_up_s, w_qk_plus,
            wv_plus, w_down, w_ffu_s, w_ffd)


# --------------------------------- wrapper -----------------------------------
def xlstm_block_forward(x, kernel_params):
    """Hot path: reshape + a single grid-less pallas_call (everything in VMEM)."""
    const16, const64, w_up_s, w_qk_plus, wv_plus, w_down, w_ffu_s, w_ffd = kernel_params
    x2d = x.reshape(BS, D)
    out2d = pl.pallas_call(
        xlstm_block_kernel,
        out_shape=jax.ShapeDtypeStruct((BS, D), jnp.float32),
    )(x2d, const16, const64, w_up_s, w_qk_plus, wv_plus, w_down, w_ffu_s, w_ffd)
    return out2d.reshape(B, S, D)


# --------------------------- pure-JAX reference -------------------------------
def reference_forward(x, params):
    (ln1_w, w_up, w_conv, b_conv, wq, wk, wv, wi, bi, wf, bf,
     w_on, skip, w_down, ln2_w, w_ffu, w_ffd) = params
    hp = jax.lax.Precision.HIGHEST

    def ln(t, w):
        mu = jnp.mean(t, -1, keepdims=True)
        var = jnp.mean((t - mu) ** 2, -1, keepdims=True)
        return (t - mu) / jnp.sqrt(var + LN_EPS) * (1.0 + w)

    def one_batch(xb):                                        # (S, D)
        xn = ln(xb, ln1_w[0])
        xi = jnp.dot(xn, w_up, precision=hp)
        xm, z = xi[:, :D_INNER], xi[:, D_INNER:]

        xpad = jnp.concatenate([jnp.zeros((CONV_K - 1, D_INNER), xm.dtype), xm], 0)
        conv = b_conv[0] + sum(w_conv[k] * xpad[k:k + S] for k in range(CONV_K))
        xca = conv * jax.nn.sigmoid(conv)

        q = jnp.dot(xca, wq, precision=hp)
        k = jnp.dot(xca, wk, precision=hp)
        v = jnp.dot(xm, wv, precision=hp)

        ifg = jnp.concatenate([q, k, v], -1)
        ig = jnp.dot(ifg, wi, precision=hp) + bi[0]
        fg = jnp.dot(ifg, wf, precision=hp) + bf[0]

        qh = q.reshape(S, NH, DH).transpose(1, 0, 2)
        kh = k.reshape(S, NH, DH).transpose(1, 0, 2)
        vh = v.reshape(S, NH, DH).transpose(1, 0, 2)
        ig_t = ig.T[:, :, None]
        fg_t = fg.T[:, :, None]

        log_fg = jax.nn.log_sigmoid(fg_t)
        cs = jnp.concatenate([jnp.zeros((NH, 1, 1)), jnp.cumsum(log_fg, axis=1)], axis=1)
        mat = cs - cs.transpose(0, 2, 1)
        ltr = jnp.tril(jnp.ones((S, S), bool))
        log_fg_mat = jnp.where(ltr, mat[:, 1:, 1:], -jnp.inf)
        log_d = log_fg_mat + ig_t.transpose(0, 2, 1)
        max_log_d = jnp.max(log_d, axis=-1, keepdims=True)
        d_mat = jnp.exp(log_d - max_log_d)
        qk = jnp.einsum('hsd,htd->hst', qh, kh / math.sqrt(DH), precision=hp)
        c = qk * d_mat
        norm = jnp.maximum(jnp.abs(c.sum(-1, keepdims=True)), jnp.exp(-max_log_d))
        cn = c / (norm + BACKEND_EPS)
        hh = jnp.einsum('hst,htd->hsd', cn, vh, precision=hp)

        mu = jnp.mean(hh, -1, keepdims=True)
        var = jnp.mean((hh - mu) ** 2, -1, keepdims=True)
        hhn = (hh - mu) / jnp.sqrt(var + GN_EPS) * (1.0 + w_on[0].reshape(NH, 1, DH))
        h_tilde = hhn.transpose(1, 0, 2).reshape(S, D_INNER)

        h_skip = h_tilde + skip[0] * xca
        h_state = h_skip * (z * jax.nn.sigmoid(z))
        x1 = xb + jnp.dot(h_state, w_down, precision=hp)

        x1n = ln(x1, ln2_w[0])
        ff = jnp.dot(x1n, w_ffu, precision=hp)
        gate, up = ff[:, :D_FF], ff[:, D_FF:]
        y2 = jnp.dot(jax.nn.gelu(gate, approximate=False) * up, w_ffd, precision=hp)
        return x1 + y2

    return jax.vmap(one_batch)(x)


# ----------------------------------- main -------------------------------------
if __name__ == "__main__":
    key = jax.random.PRNGKey(0)
    keys = jax.random.split(key, 20)

    def rnd(k, shape, scale=0.1):
        return (scale * jax.random.normal(k, shape)).astype(jnp.float32)

    x = jax.random.normal(keys[0], (B, S, D), dtype=jnp.float32)

    ln1_w = rnd(keys[1], (1, D))
    w_up = rnd(keys[2], (D, 2 * D_INNER))
    w_conv = rnd(keys[3], (CONV_K, D_INNER), 0.3)     # depthwise kernel, (K, Di)
    b_conv = rnd(keys[4], (1, D_INNER))

    # LinearHeadwiseExpand (block-diagonal) weights, expanded to dense (Di, Di)
    # at param-prep time; the matmul itself runs inside the kernel.
    def headwise(kk):
        blocks = rnd(kk, (NUM_PROJ_HEADS, QKV_BLOCK, QKV_BLOCK), 0.3)
        full = jax.scipy.linalg.block_diag(*[blocks[i] for i in range(NUM_PROJ_HEADS)])
        return jnp.asarray(full.T, jnp.float32)       # so that out = x @ W

    wq = headwise(keys[5])
    wk = headwise(keys[6])
    wv = headwise(keys[7])

    wi = rnd(keys[8], (3 * D_INNER, NH))
    bi = rnd(keys[9], (1, NH))
    wf = rnd(keys[10], (3 * D_INNER, NH))
    bf = jnp.linspace(3.0, 6.0, NH, dtype=jnp.float32).reshape(1, NH)  # fgate bias init
    w_on = rnd(keys[11], (1, D_INNER))                # MultiHeadLayerNorm weight (raw)
    skip = jnp.ones((1, D_INNER), jnp.float32) + rnd(keys[12], (1, D_INNER))
    w_down = rnd(keys[13], (D_INNER, D))
    ln2_w = rnd(keys[14], (1, D))
    w_ffu = rnd(keys[15], (D, 2 * D_FF))
    w_ffd = rnd(keys[16], (D_FF, D))

    params = (ln1_w, w_up, w_conv, b_conv, wq, wk, wv, wi, bi, wf, bf,
              w_on, skip, w_down, ln2_w, w_ffu, w_ffd)

    kernel_params = prepare_params(params)            # one-time, off the hot path

    out = xlstm_block_forward(x, kernel_params)
    out = jax.block_until_ready(out)

    ref = reference_forward(x, params)
    np.testing.assert_allclose(np.asarray(out), np.asarray(ref), rtol=5e-3, atol=5e-3)

    print("KERNEL_OK")
</pallas_src>

<mosaic_0001>
module attributes {stable_mosaic.version = 11 : i64} {
  func.func @xlstm_block_kernel(%arg0: memref<16x32xf32, #tpu.memory_space<vmem>>, %arg1: memref<208x16xf32, #tpu.memory_space<vmem>>, %arg2: memref<120x64xf32, #tpu.memory_space<vmem>>, %arg3: memref<32x128xf32, #tpu.memory_space<vmem>>, %arg4: memref<64x136xf32, #tpu.memory_space<vmem>>, %arg5: memref<64x72xf32, #tpu.memory_space<vmem>>, %arg6: memref<64x32xf32, #tpu.memory_space<vmem>>, %arg7: memref<32x128xf32, #tpu.memory_space<vmem>>, %arg8: memref<64x32xf32, #tpu.memory_space<vmem>>, %arg9: memref<16x32xf32, #tpu.memory_space<vmem>>) attributes {dimension_semantics = [], scalar_prefetch = 0 : i64, scratch_operands = 0 : i64, tpu.core_type = #tpu.core_type<tc>} {
    %c0 = arith.constant 0 : index
    %c0_0 = arith.constant 0 : index
    %0 = vector.load %arg0[%c0, %c0_0] : memref<16x32xf32, #tpu.memory_space<vmem>>, vector<16x32xf32>
    %c0_1 = arith.constant 0 : index
    %c0_2 = arith.constant 0 : index
    %1 = vector.load %arg1[%c0_1, %c0_2] : memref<208x16xf32, #tpu.memory_space<vmem>>, vector<16x16xf32>
    %c16 = arith.constant 16 : index
    %c0_3 = arith.constant 0 : index
    %2 = vector.load %arg1[%c16, %c0_3] : memref<208x16xf32, #tpu.memory_space<vmem>>, vector<64x16xf32>
    %c80 = arith.constant 80 : index
    %c0_4 = arith.constant 0 : index
    %3 = vector.load %arg1[%c80, %c0_4] : memref<208x16xf32, #tpu.memory_space<vmem>>, vector<64x16xf32>
    %c144 = arith.constant 144 : index
    %c0_5 = arith.constant 0 : index
    %4 = vector.load %arg1[%c144, %c0_5] : memref<208x16xf32, #tpu.memory_space<vmem>>, vector<64x4xf32>
    %c0_6 = arith.constant 0 : index
    %c0_7 = arith.constant 0 : index
    %5 = vector.load %arg2[%c0_6, %c0_7] : memref<120x64xf32, #tpu.memory_space<vmem>>, vector<64x64xf32>
    %c112 = arith.constant 112 : index
    %c0_8 = arith.constant 0 : index
    %6 = vector.load %arg2[%c112, %c0_8] : memref<120x64xf32, #tpu.memory_space<vmem>>, vector<1x64xf32>
    %c113 = arith.constant 113 : index
    %c0_9 = arith.constant 0 : index
    %7 = vector.load %arg2[%c113, %c0_9] : memref<120x64xf32, #tpu.memory_space<vmem>>, vector<1x64xf32>
    %c114 = arith.constant 114 : index
    %c0_10 = arith.constant 0 : index
    %8 = vector.load %arg2[%c114, %c0_10] : memref<120x64xf32, #tpu.memory_space<vmem>>, vector<1x64xf32>
    %c115 = arith.constant 115 : index
    %c0_11 = arith.constant 0 : index
    %9 = vector.load %arg2[%c115, %c0_11] : memref<120x64xf32, #tpu.memory_space<vmem>>, vector<1x64xf32>
    %c116 = arith.constant 116 : index
    %c0_12 = arith.constant 0 : index
    %10 = vector.load %arg2[%c116, %c0_12] : memref<120x64xf32, #tpu.memory_space<vmem>>, vector<1x8xf32>
    %cst = arith.constant dense<0.000000e+00> : vector<16xf32>
    %11 = vector.multi_reduction <add>, %0, %cst [1] : vector<16x32xf32> to vector<16xf32>
    %12 = vector.shape_cast %11 : vector<16xf32> to vector<16x1xf32>
    %cst_13 = arith.constant 3.200000e+01 : f32
    %13 = vector.broadcast %cst_13 : f32 to vector<16x1xf32>
    %14 = arith.divf %12, %13 : vector<16x1xf32>
    %15 = vector.broadcast %14 : vector<16x1xf32> to vector<16x32xf32>
    %16 = arith.subf %0, %15 : vector<16x32xf32>
    %17 = arith.mulf %16, %16 : vector<16x32xf32>
    %cst_14 = arith.constant dense<0.000000e+00> : vector<16xf32>
    %18 = vector.multi_reduction <add>, %17, %cst_14 [1] : vector<16x32xf32> to vector<16xf32>
    %19 = vector.shape_cast %18 : vector<16xf32> to vector<16x1xf32>
    %cst_15 = arith.constant 3.200000e+01 : f32
    %20 = vector.broadcast %cst_15 : f32 to vector<16x1xf32>
    %21 = arith.divf %19, %20 : vector<16x1xf32>
    %cst_16 = arith.constant 9.99999974E-6 : f32
    %22 = vector.broadcast %cst_16 : f32 to vector<16x1xf32>
    %23 = arith.addf %21, %22 : vector<16x1xf32>
    %24 = math.rsqrt %23 : vector<16x1xf32>
    %25 = vector.broadcast %24 : vector<16x1xf32> to vector<16x32xf32>
    %26 = arith.mulf %16, %25 : vector<16x32xf32>
    %c0_17 = arith.constant 0 : index
    %c0_18 = arith.constant 0 : index
    %27 = vector.load %arg3[%c0_17, %c0_18] : memref<32x128xf32, #tpu.memory_space<vmem>>, vector<32x128xf32>
    %cst_19 = arith.constant dense<0.000000e+00> : vector<16x128xf32>
    %28 = tpu.matmul %26, %27, %cst_19 {dimension_numbers = #tpu.dot_dimension_numbers<[1], [0], [0], [1], [0, 0, 1, 1], [], []>} : vector<16x32xf32>, vector<32x128xf32>, vector<16x128xf32> -> vector<16x128xf32>
    %29 = vector.extract_strided_slice %28 {offsets = [0, 0], sizes = [16, 64], strides = [1, 1]} : vector<16x128xf32> to vector<16x64xf32>
    %30 = vector.extract_strided_slice %28 {offsets = [0, 64], sizes = [16, 64], strides = [1, 1]} : vector<16x128xf32> to vector<16x64xf32>
    %31 = vector.broadcast %6 : vector<1x64xf32> to vector<16x64xf32>
    %32 = arith.mulf %29, %31 : vector<16x64xf32>
    %33 = vector.broadcast %7 : vector<1x64xf32> to vector<16x64xf32>
    %34 = arith.addf %32, %33 : vector<16x64xf32>
    %c64 = arith.constant 64 : index
    %c0_20 = arith.constant 0 : index
    %35 = vector.load %arg2[%c64, %c0_20] : memref<120x64xf32, #tpu.memory_space<vmem>>, vector<16x64xf32>
    %c1_i32 = arith.constant 1 : i32
    %36 = tpu.dynamic_rotate %29 by %c1_i32 dim 0 : vector<16x64xf32>, i32 -> vector<16x64xf32>
    %37 = arith.mulf %36, %35 : vector<16x64xf32>
    %38 = arith.addf %34, %37 : vector<16x64xf32>
    %c80_21 = arith.constant 80 : index
    %c0_22 = arith.constant 0 : index
    %39 = vector.load %arg2[%c80_21, %c0_22] : memref<120x64xf32, #tpu.memory_space<vmem>>, vector<16x64xf32>
    %c2_i32 = arith.constant 2 : i32
    %40 = tpu.dynamic_rotate %29 by %c2_i32 dim 0 : vector<16x64xf32>, i32 -> vector<16x64xf32>
    %41 = arith.mulf %40, %39 : vector<16x64xf32>
    %42 = arith.addf %38, %41 : vector<16x64xf32>
    %c96 = arith.constant 96 : index
    %c0_23 = arith.constant 0 : index
    %43 = vector.load %arg2[%c96, %c0_23] : memref<120x64xf32, #tpu.memory_space<vmem>>, vector<16x64xf32>
    %c3_i32 = arith.constant 3 : i32
    %44 = tpu.dynamic_rotate %29 by %c3_i32 dim 0 : vector<16x64xf32>, i32 -> vector<16x64xf32>
    %45 = arith.mulf %44, %43 : vector<16x64xf32>
    %46 = arith.addf %42, %45 : vector<16x64xf32>
    %47 = arith.negf %46 : vector<16x64xf32>
    %48 = math.exp %47 : vector<16x64xf32>
    %cst_24 = arith.constant 1.000000e+00 : f32
    %49 = vector.broadcast %cst_24 : f32 to vector<16x64xf32>
    %50 = arith.addf %49, %48 : vector<16x64xf32>
    %51 = arith.divf %49, %50 : vector<16x64xf32>
    %52 = arith.mulf %46, %51 : vector<16x64xf32>
    %c0_25 = arith.constant 0 : index
    %c0_26 = arith.constant 0 : index
    %53 = vector.load %arg4[%c0_25, %c0_26] : memref<64x136xf32, #tpu.memory_space<vmem>>, vector<64x136xf32>
    %cst_27 = arith.constant dense<0.000000e+00> : vector<16x136xf32>
    %54 = tpu.matmul %52, %53, %cst_27 {dimension_numbers = #tpu.dot_dimension_numbers<[1], [0], [0], [1], [0, 0, 1, 1], [], []>} : vector<16x64xf32>, vector<64x136xf32>, vector<16x136xf32> -> vector<16x136xf32>
    %c0_28 = arith.constant 0 : index
    %c0_29 = arith.constant 0 : index
    %55 = vector.load %arg5[%c0_28, %c0_29] : memref<64x72xf32, #tpu.memory_space<vmem>>, vector<64x72xf32>
    %cst_30 = arith.constant dense<0.000000e+00> : vector<16x72xf32>
    %56 = tpu.matmul %29, %55, %cst_30 {dimension_numbers = #tpu.dot_dimension_numbers<[1], [0], [0], [1], [0, 0, 1, 1], [], []>} : vector<16x64xf32>, vector<64x72xf32>, vector<16x72xf32> -> vector<16x72xf32>
    %57 = vector.extract_strided_slice %54 {offsets = [0, 0], sizes = [16, 64], strides = [1, 1]} : vector<16x136xf32> to vector<16x64xf32>
    %58 = vector.extract_strided_slice %54 {offsets = [0, 64], sizes = [16, 64], strides = [1, 1]} : vector<16x136xf32> to vector<16x64xf32>
    %59 = vector.extract_strided_slice %56 {offsets = [0, 0], sizes = [16, 64], strides = [1, 1]} : vector<16x72xf32> to vector<16x64xf32>
    %60 = vector.extract_strided_slice %54 {offsets = [0, 128], sizes = [16, 8], strides = [1, 1]} : vector<16x136xf32> to vector<16x8xf32>
    %61 = vector.extract_strided_slice %56 {offsets = [0, 64], sizes = [16, 8], strides = [1, 1]} : vector<16x72xf32> to vector<16x8xf32>
    %62 = arith.addf %60, %61 : vector<16x8xf32>
    %63 = vector.broadcast %10 : vector<1x8xf32> to vector<16x8xf32>
    %64 = arith.addf %62, %63 : vector<16x8xf32>
    %65 = vector.extract_strided_slice %64 {offsets = [0, 0], sizes = [16, 4], strides = [1, 1]} : vector<16x8xf32> to vector<16x4xf32>
    %66 = vector.extract_strided_slice %64 {offsets = [0, 4], sizes = [16, 4], strides = [1, 1]} : vector<16x8xf32> to vector<16x4xf32>
    %cst_31 = arith.constant 0.000000e+00 : f32
    %67 = vector.broadcast %cst_31 : f32 to vector<16x4xf32>
    %68 = arith.minimumf %66, %67 : vector<16x4xf32>
    %69 = math.absf %66 : vector<16x4xf32>
    %cst_32 = arith.constant 0.000000e+00 : f32
    %70 = vector.broadcast %cst_32 : f32 to vector<16x4xf32>
    %71 = arith.subf %70, %69 : vector<16x4xf32>
    %72 = math.exp %71 : vector<16x4xf32>
    %cst_33 = arith.constant 1.000000e+00 : f32
    %73 = vector.broadcast %cst_33 : f32 to vector<16x4xf32>
    %74 = arith.addf %73, %72 : vector<16x4xf32>
    %75 = math.log %74 : vector<16x4xf32>
    %76 = arith.subf %68, %75 : vector<16x4xf32>
    %cst_34 = arith.constant dense<0.000000e+00> : vector<16x4xf32>
    %77 = tpu.matmul %1, %76, %cst_34 {dimension_numbers = #tpu.dot_dimension_numbers<[1], [0], [0], [1], [0, 0, 1, 1], [], []>} : vector<16x16xf32>, vector<16x4xf32>, vector<16x4xf32> -> vector<16x4xf32>
    %78 = arith.subf %65, %77 : vector<16x4xf32>
    %cst_35 = arith.constant dense<0.000000e+00> : vector<64x4xf32>
    %79 = tpu.matmul %3, %77, %cst_35 {dimension_numbers = #tpu.dot_dimension_numbers<[1], [0], [0], [1], [0, 0, 1, 1], [], []>} : vector<64x16xf32>, vector<16x4xf32>, vector<64x4xf32> -> vector<64x4xf32>
    %80 = arith.mulf %79, %4 : vector<64x4xf32>
    %cst_36 = arith.constant dense<0.000000e+00> : vector<64xf32>
    %81 = vector.multi_reduction <add>, %80, %cst_36 [1] : vector<64x4xf32> to vector<64xf32>
    %82 = vector.shape_cast %81 : vector<64xf32> to vector<64x1xf32>
    %cst_37 = arith.constant dense<0.000000e+00> : vector<64x16xf32>
    %83 = tpu.matmul %4, %78, %cst_37 {dimension_numbers = #tpu.dot_dimension_numbers<[1], [1], [0], [0], [0, 0, 1, 0], [], []>} : vector<64x4xf32>, vector<16x4xf32>, vector<64x16xf32> -> vector<64x16xf32>
    %84 = vector.broadcast %82 : vector<64x1xf32> to vector<64x16xf32>
    %85 = arith.addf %84, %83 : vector<64x16xf32>
    %86 = arith.addf %85, %2 : vector<64x16xf32>
    %cst_38 = arith.constant dense<0xFF800000> : vector<64xf32>
    %87 = vector.multi_reduction <maximumf>, %86, %cst_38 [1] : vector<64x16xf32> to vector<64xf32>
    %88 = vector.shape_cast %87 : vector<64xf32> to vector<64x1xf32>
    %89 = vector.broadcast %88 : vector<64x1xf32> to vector<64x16xf32>
    %90 = arith.subf %86, %89 : vector<64x16xf32>
    %91 = math.exp %90 : vector<64x16xf32>
    %cst_39 = arith.constant dense<0.000000e+00> : vector<64x64xf32>
    %92 = tpu.matmul %3, %57, %cst_39 {dimension_numbers = #tpu.dot_dimension_numbers<[1], [0], [0], [1], [0, 0, 1, 1], [], []>} : vector<64x16xf32>, vector<16x64xf32>, vector<64x64xf32> -> vector<64x64xf32>
    %93 = arith.mulf %92, %5 : vector<64x64xf32>
    %cst_40 = arith.constant dense<0.000000e+00> : vector<64x16xf32>
    %94 = tpu.matmul %93, %58, %cst_40 {dimension_numbers = #tpu.dot_dimension_numbers<[1], [1], [0], [0], [0, 0, 1, 0], [], []>} : vector<64x64xf32>, vector<16x64xf32>, vector<64x16xf32> -> vector<64x16xf32>
    %95 = arith.mulf %94, %91 : vector<64x16xf32>
    %cst_41 = arith.constant dense<0.000000e+00> : vector<64xf32>
    %96 = vector.multi_reduction <add>, %95, %cst_41 [1] : vector<64x16xf32> to vector<64xf32>
    %97 = vector.shape_cast %96 : vector<64xf32> to vector<64x1xf32>
    %98 = math.absf %97 : vector<64x1xf32>
    %cst_42 = arith.constant 0.000000e+00 : f32
    %99 = vector.broadcast %cst_42 : f32 to vector<64x1xf32>
    %100 = arith.subf %99, %88 : vector<64x1xf32>
    %101 = math.exp %100 : vector<64x1xf32>
    %102 = arith.maximumf %98, %101 : vector<64x1xf32>
    %cst_43 = arith.constant 9.99999997E-7 : f32
    %103 = vector.broadcast %cst_43 : f32 to vector<64x1xf32>
    %104 = arith.addf %102, %103 : vector<64x1xf32>
    %105 = tpu.reciprocal %104 {approx = true} : vector<64x1xf32> -> vector<64x1xf32>
    %106 = vector.broadcast %105 : vector<64x1xf32> to vector<64x16xf32>
    %107 = arith.mulf %95, %106 : vector<64x16xf32>
    %cst_44 = arith.constant dense<0.000000e+00> : vector<64x64xf32>
    %108 = tpu.matmul %107, %59, %cst_44 {dimension_numbers = #tpu.dot_dimension_numbers<[1], [0], [0], [1], [0, 0, 1, 1], [], []>} : vector<64x16xf32>, vector<16x64xf32>, vector<64x64xf32> -> vector<64x64xf32>
    %109 = arith.mulf %108, %5 : vector<64x64xf32>
    %cst_45 = arith.constant dense<0.000000e+00> : vector<64xf32>
    %110 = vector.multi_reduction <add>, %109, %cst_45 [1] : vector<64x64xf32> to vector<64xf32>
    %111 = vector.shape_cast %110 : vector<64xf32> to vector<64x1xf32>
    %cst_46 = arith.constant 6.250000e-02 : f32
    %112 = vector.broadcast %cst_46 : f32 to vector<64x1xf32>
    %113 = arith.mulf %111, %112 : vector<64x1xf32>
    %114 = vector.broadcast %113 : vector<64x1xf32> to vector<64x64xf32>
    %115 = arith.subf %109, %114 : vector<64x64xf32>
    %116 = arith.mulf %115, %5 : vector<64x64xf32>
    %117 = arith.mulf %116, %116 : vector<64x64xf32>
    %cst_47 = arith.constant dense<0.000000e+00> : vector<64xf32>
    %118 = vector.multi_reduction <add>, %117, %cst_47 [1] : vector<64x64xf32> to vector<64xf32>
    %119 = vector.shape_cast %118 : vector<64xf32> to vector<64x1xf32>
    %cst_48 = arith.constant 6.250000e-02 : f32
    %120 = vector.broadcast %cst_48 : f32 to vector<64x1xf32>
    %121 = arith.mulf %119, %120 : vector<64x1xf32>
    %cst_49 = arith.constant 9.99999974E-6 : f32
    %122 = vector.broadcast %cst_49 : f32 to vector<64x1xf32>
    %123 = arith.addf %121, %122 : vector<64x1xf32>
    %124 = math.rsqrt %123 : vector<64x1xf32>
    %125 = vector.broadcast %124 : vector<64x1xf32> to vector<64x64xf32>
    %126 = arith.mulf %116, %125 : vector<64x64xf32>
    %127 = vector.extract_strided_slice %126 {offsets = [0, 0], sizes = [16, 64], strides = [1, 1]} : vector<64x64xf32> to vector<16x64xf32>
    %128 = vector.extract_strided_slice %126 {offsets = [16, 0], sizes = [16, 64], strides = [1, 1]} : vector<64x64xf32> to vector<16x64xf32>
    %129 = arith.addf %127, %128 : vector<16x64xf32>
    %130 = vector.extract_strided_slice %126 {offsets = [32, 0], sizes = [16, 64], strides = [1, 1]} : vector<64x64xf32> to vector<16x64xf32>
    %131 = arith.addf %129, %130 : vector<16x64xf32>
    %132 = vector.extract_strided_slice %126 {offsets = [48, 0], sizes = [16, 64], strides = [1, 1]} : vector<64x64xf32> to vector<16x64xf32>
    %133 = arith.addf %131, %132 : vector<16x64xf32>
    %134 = vector.broadcast %8 : vector<1x64xf32> to vector<16x64xf32>
    %135 = arith.mulf %133, %134 : vector<16x64xf32>
    %136 = vector.broadcast %9 : vector<1x64xf32> to vector<16x64xf32>
    %137 = arith.mulf %136, %52 : vector<16x64xf32>
    %138 = arith.addf %135, %137 : vector<16x64xf32>
    %139 = arith.negf %30 : vector<16x64xf32>
    %140 = math.exp %139 : vector<16x64xf32>
    %cst_50 = arith.constant 1.000000e+00 : f32
    %141 = vector.broadcast %cst_50 : f32 to vector<16x64xf32>
    %142 = arith.addf %141, %140 : vector<16x64xf32>
    %143 = arith.divf %141, %142 : vector<16x64xf32>
    %144 = arith.mulf %30, %143 : vector<16x64xf32>
    %145 = arith.mulf %138, %144 : vector<16x64xf32>
    %c0_51 = arith.constant 0 : index
    %c0_52 = arith.constant 0 : index
    %146 = vector.load %arg6[%c0_51, %c0_52] : memref<64x32xf32, #tpu.memory_space<vmem>>, vector<64x32xf32>
    %cst_53 = arith.constant dense<0.000000e+00> : vector<16x32xf32>
    %147 = tpu.matmul %145, %146, %cst_53 {dimension_numbers = #tpu.dot_dimension_numbers<[1], [0], [0], [1], [0, 0, 1, 1], [], []>} : vector<16x64xf32>, vector<64x32xf32>, vector<16x32xf32> -> vector<16x32xf32>
    %148 = arith.addf %0, %147 : vector<16x32xf32>
    %cst_54 = arith.constant dense<0.000000e+00> : vector<16xf32>
    %149 = vector.multi_reduction <add>, %148, %cst_54 [1] : vector<16x32xf32> to vector<16xf32>
    %150 = vector.shape_cast %149 : vector<16xf32> to vector<16x1xf32>
    %cst_55 = arith.constant 3.200000e+01 : f32
    %151 = vector.broadcast %cst_55 : f32 to vector<16x1xf32>
    %152 = arith.divf %150, %151 : vector<16x1xf32>
    %153 = vector.broadcast %152 : vector<16x1xf32> to vector<16x32xf32>
    %154 = arith.subf %148, %153 : vector<16x32xf32>
    %155 = arith.mulf %154, %154 : vector<16x32xf32>
    %cst_56 = arith.constant dense<0.000000e+00> : vector<16xf32>
    %156 = vector.multi_reduction <add>, %155, %cst_56 [1] : vector<16x32xf32> to vector<16xf32>
    %157 = vector.shape_cast %156 : vector<16xf32> to vector<16x1xf32>
    %cst_57 = arith.constant 3.200000e+01 : f32
    %158 = vector.broadcast %cst_57 : f32 to vector<16x1xf32>
    %159 = arith.divf %157, %158 : vector<16x1xf32>
    %cst_58 = arith.constant 9.99999974E-6 : f32
    %160 = vector.broadcast %cst_58 : f32 to vector<16x1xf32>
    %161 = arith.addf %159, %160 : vector<16x1xf32>
    %162 = math.rsqrt %161 : vector<16x1xf32>
    %163 = vector.broadcast %162 : vector<16x1xf32> to vector<16x32xf32>
    %164 = arith.mulf %154, %163 : vector<16x32xf32>
    %c0_59 = arith.constant 0 : index
    %c0_60 = arith.constant 0 : index
    %165 = vector.load %arg7[%c0_59, %c0_60] : memref<32x128xf32, #tpu.memory_space<vmem>>, vector<32x128xf32>
    %cst_61 = arith.constant dense<0.000000e+00> : vector<16x128xf32>
    %166 = tpu.matmul %164, %165, %cst_61 {dimension_numbers = #tpu.dot_dimension_numbers<[1], [0], [0], [1], [0, 0, 1, 1], [], []>} : vector<16x32xf32>, vector<32x128xf32>, vector<16x128xf32> -> vector<16x128xf32>
    %167 = vector.extract_strided_slice %166 {offsets = [0, 0], sizes = [16, 64], strides = [1, 1]} : vector<16x128xf32> to vector<16x64xf32>
    %168 = vector.extract_strided_slice %166 {offsets = [0, 64], sizes = [16, 64], strides = [1, 1]} : vector<16x128xf32> to vector<16x64xf32>
    %cst_62 = arith.constant 5.000000e-01 : f32
    %169 = vector.broadcast %cst_62 : f32 to vector<16x64xf32>
    %170 = arith.mulf %169, %167 : vector<16x64xf32>
    %cst_63 = arith.constant 4.471500e-02 : f32
    %171 = vector.broadcast %cst_63 : f32 to vector<16x64xf32>
    %172 = arith.mulf %171, %167 : vector<16x64xf32>
    %173 = arith.mulf %172, %167 : vector<16x64xf32>
    %174 = arith.mulf %173, %167 : vector<16x64xf32>
    %175 = arith.addf %167, %174 : vector<16x64xf32>
    %cst_64 = arith.constant 0.797884583 : f32
    %176 = vector.broadcast %cst_64 : f32 to vector<16x64xf32>
    %177 = arith.mulf %176, %175 : vector<16x64xf32>
    %178 = math.tanh %177 : vector<16x64xf32>
    %cst_65 = arith.constant 1.000000e+00 : f32
    %179 = vector.broadcast %cst_65 : f32 to vector<16x64xf32>
    %180 = arith.addf %179, %178 : vector<16x64xf32>
    %181 = arith.mulf %170, %180 : vector<16x64xf32>
    %182 = arith.mulf %181, %168 : vector<16x64xf32>
    %c0_66 = arith.constant 0 : index
    %c0_67 = arith.constant 0 : index
    %183 = vector.load %arg8[%c0_66, %c0_67] : memref<64x32xf32, #tpu.memory_space<vmem>>, vector<64x32xf32>
    %cst_68 = arith.constant dense<0.000000e+00> : vector<16x32xf32>
    %184 = tpu.matmul %182, %183, %cst_68 {dimension_numbers = #tpu.dot_dimension_numbers<[1], [0], [0], [1], [0, 0, 1, 1], [], []>} : vector<16x64xf32>, vector<64x32xf32>, vector<16x32xf32> -> vector<16x32xf32>
    %185 = arith.addf %148, %184 : vector<16x32xf32>
    %c0_69 = arith.constant 0 : index
    %c0_70 = arith.constant 0 : index
    %186 = vector.load %arg9[%c0_69, %c0_70] : memref<16x32xf32, #tpu.memory_space<vmem>>, vector<16x32xf32>
    tpu.vector_store %arg9[%c0_69, %c0_70], %185 {strides = array<i32>} : memref<16x32xf32, #tpu.memory_space<vmem>>, vector<16x32xf32>,
    return
  }
}

</mosaic_0001>

<llo_original>
// kernel: tpu_custom_call.1
$region0: #{tpu_custom_call.1}
  #allocation0 [shape = 'u32[]', space=smem, size = 0x4, offset = 0x4, fixed_abs, tag = 'smem constant byte address 0x4 - core index']
  #allocation1 [shape = 'u32[144,128]{1,0:T(1,128)}', space=vmem, size = 0x12000, scoped, tag = 'internal scratch']
  %s0 = inlined_call_operand.vmem [shape: f32[16,32], index: 0, kind: input, shape index: {}]
  %s1 = inlined_call_operand.vmem [shape: f32[208,16], index: 1, kind: input, shape index: {}]
  %s2 = inlined_call_operand.vmem [shape: f32[120,64], index: 2, kind: input, shape index: {}]
  %s3 = inlined_call_operand.vmem [shape: f32[32,128], index: 3, kind: input, shape index: {}]
  %s4 = inlined_call_operand.vmem [shape: f32[64,136], index: 4, kind: input, shape index: {}]
  %s5 = inlined_call_operand.vmem [shape: f32[64,72], index: 5, kind: input, shape index: {}]
  %s6 = inlined_call_operand.vmem [shape: f32[64,32], index: 6, kind: input, shape index: {}]
  %s7 = inlined_call_operand.vmem [shape: f32[32,128], index: 7, kind: input, shape index: {}]
  %s8 = inlined_call_operand.vmem [shape: f32[64,32], index: 8, kind: input, shape index: {}]
  %s9 = inlined_call_operand.hbm [shape: f32[16,32], index: 9, kind: output, shape index: {}]
  %s10 = sld [smem:[#allocation0]]
  $region46: #{tpu_custom_call.1} parent=0
    _
  %s12 = ssub.s32 1, %s10
  %s13 = scalar_select 0, %s12, %s10
  $region1: #{tpu_custom_call.1} parent=0
    #allocation2 [shape = 'u8[8192]{0}', space=vmem, size = 0x2000, scoped, tag = 'output window, operand 0, single buffered']
    #allocation3 [shape = 's32[1]{0}', space=sflag, size = 0x4, scoped, tag = 'scoped memory for tpu_custom_call.1']
    %14 = vsyncpa [#allocation3], 0
    // Predicated region
    $region2: #{tpu_custom_call.1} parent=1 // pred_check
      _
    $region3: #{tpu_custom_call.1} parent=1 // pred_check_branch
      %16 = sbr.rel (0) target = $region5
    $region4: #{tpu_custom_call.1} parent=1 // pred_region
      _
    $region5: #{tpu_custom_call.1} parent=1 // pred_fallthru
      _
    // Predicated region
    $region6: #{tpu_custom_call.1} parent=1 // pred_check
      _
    $region7: #{tpu_custom_call.1} parent=1 // pred_check_branch
      %18 = sbr.rel (0) target = $region9
    $region8: #{tpu_custom_call.1} parent=1 // pred_region
      _
    $region9: #{tpu_custom_call.1} parent=1 // pred_fallthru
      _
    // Predicated region
    $region10: #{tpu_custom_call.1} parent=1 // pred_check
      _
    $region11: #{tpu_custom_call.1} parent=1 // pred_check_branch
      %20 = sbr.rel (0) target = $region13
    $region12: #{tpu_custom_call.1} parent=1 // pred_region
      _
    $region13: #{tpu_custom_call.1} parent=1 // pred_fallthru
      _
    // Predicated region
    $region14: #{tpu_custom_call.1} parent=1 // pred_check
      _
    $region15: #{tpu_custom_call.1} parent=1 // pred_check_branch
      %22 = sbr.rel (0) target = $region17
    $region16: #{tpu_custom_call.1} parent=1 // pred_region
      _
    $region17: #{tpu_custom_call.1} parent=1 // pred_fallthru
      _
    // Predicated region
    $region18: #{tpu_custom_call.1} parent=1 // pred_check
      _
    $region19: #{tpu_custom_call.1} parent=1 // pred_check_branch
      %24 = sbr.rel (0) target = $region21
    $region20: #{tpu_custom_call.1} parent=1 // pred_region
      _
    $region21: #{tpu_custom_call.1} parent=1 // pred_fallthru
      _
    // Predicated region
    $region22: #{tpu_custom_call.1} parent=1 // pred_check
      _
    $region23: #{tpu_custom_call.1} parent=1 // pred_check_branch
      %26 = sbr.rel (0) target = $region25
    $region24: #{tpu_custom_call.1} parent=1 // pred_region
      _
    $region25: #{tpu_custom_call.1} parent=1 // pred_fallthru
      _
    // Predicated region
    $region26: #{tpu_custom_call.1} parent=1 // pred_check
      _
    $region27: #{tpu_custom_call.1} parent=1 // pred_check_branch
      %28 = sbr.rel (0) target = $region29
    $region28: #{tpu_custom_call.1} parent=1 // pred_region
      _
    $region29: #{tpu_custom_call.1} parent=1 // pred_fallthru
      _
    // Predicated region
    $region30: #{tpu_custom_call.1} parent=1 // pred_check
      _
    $region31: #{tpu_custom_call.1} parent=1 // pred_check_branch
      %30 = sbr.rel (0) target = $region33
    $region32: #{tpu_custom_call.1} parent=1 // pred_region
      _
    $region33: #{tpu_custom_call.1} parent=1 // pred_fallthru
      _
    // Predicated region
    $region34: #{tpu_custom_call.1} parent=1 // pred_check
      _
    $region35: #{tpu_custom_call.1} parent=1 // pred_check_branch
      %32 = sbr.rel (0) target = $region37
    $region36: #{tpu_custom_call.1} parent=1 // pred_region
      _
    $region37: #{tpu_custom_call.1} parent=1 // pred_fallthru
      _
    %v33 = vld [vmem:[%s0] sm:$0xff]
    %v34 = vld [vmem:[%s0 + $0x8] sm:$0xff]
    %v35 = vld [vmem:[%s1] sm:$0xff]
    %v36 = vld [vmem:[%s1 + $0x8] sm:$0xff]
    %v37 = vld [vmem:[%s1 + $0x10] sm:$0xff]
    %v38 = vld [vmem:[%s1 + $0x18] sm:$0xff]
    %v39 = vld [vmem:[%s1 + $0x20] sm:$0xff]
    %v40 = vld [vmem:[%s1 + $0x28] sm:$0xff]
    %v41 = vld [vmem:[%s1 + $0x30] sm:$0xff]
    %v42 = vld [vmem:[%s1 + $0x38] sm:$0xff]
    %v43 = vld [vmem:[%s1 + $0x40] sm:$0xff]
    %v44 = vld [vmem:[%s1 + $0x48] sm:$0xff]
    %v45 = vld [vmem:[%s1 + $0x50] sm:$0xff]
    %v46 = vld [vmem:[%s1 + $0x58] sm:$0xff]
    %v47 = vld [vmem:[%s1 + $0x60] sm:$0xff]
    %v48 = vld [vmem:[%s1 + $0x68] sm:$0xff]
    %v49 = vld [vmem:[%s1 + $0x70] sm:$0xff]
    %v50 = vld [vmem:[%s1 + $0x78] sm:$0xff]
    %v51 = vld [vmem:[%s1 + $0x80] sm:$0xff]
    %v52 = vld [vmem:[%s1 + $0x88] sm:$0xff]
    %v53 = vld [vmem:[%s1 + $0x90] sm:$0xff]
    %v54 = vld [vmem:[%s1 + $0x98] sm:$0xff]
    %v55 = vld [vmem:[%s1 + $0xa0] sm:$0xff]
    %v56 = vld [vmem:[%s1 + $0xa8] sm:$0xff]
    %v57 = vld [vmem:[%s1 + $0xb0] sm:$0xff]
    %v58 = vld [vmem:[%s1 + $0xb8] sm:$0xff]
    %v59 = vld [vmem:[%s1 + $0xc0] sm:$0xff]
    %v60 = vld [vmem:[%s1 + $0xc8] sm:$0xff]
    %v61 = vld [vmem:[%s2] sm:$0xff]
    %v62 = vld [vmem:[%s2 + $0x8] sm:$0xff]
    %v63 = vld [vmem:[%s2 + $0x10] sm:$0xff]
    %v64 = vld [vmem:[%s2 + $0x18] sm:$0xff]
    %v65 = vld [vmem:[%s2 + $0x20] sm:$0xff]
    %v66 = vld [vmem:[%s2 + $0x28] sm:$0xff]
    %v67 = vld [vmem:[%s2 + $0x30] sm:$0xff]
    %v68 = vld [vmem:[%s2 + $0x38] sm:$0xff]
    %v69 = vld [vmem:[%s2 + $0x70] sm:$0x1]
    %v70 = vld [vmem:[%s2 + $0x71] sm:$0x1]
    %v71 = vld [vmem:[%s2 + $0x72] sm:$0x1]
    %v72 = vld [vmem:[%s2 + $0x73] sm:$0x1]
    %v73 = vld [vmem:[%s2 + $0x74] sm:$0x1]
    %vm74 = vcmask 261120
    %v75 = vsel %vm74, %v33, 0.0
    %76 = vadd.xlane.f32.xlu0 %v75
    %v77 = vpop.xlane.xlu0 %76
    %v78 = vsel %vm74, %v34, 0.0
    %79 = vadd.xlane.f32.xlu0 %v78
    %v80 = vpop.xlane.xlu0 %79
    %v81 = vrcp.pop 32.0
    %v82 = vmul.f32 %v77, %v81
    %v83 = vmul.f32 %v80, %v81
    %v84 = vsub.f32 %v33, %v82
    %v85 = vsub.f32 %v34, %v83
    %v86 = vmul.f32 %v84, %v84
    %v87 = vmul.f32 %v85, %v85
    %v88 = vsel %vm74, %v86, 0.0
    %89 = vadd.xlane.f32.xlu0 %v88
    %v90 = vpop.xlane.xlu0 %89
    %v91 = vsel %vm74, %v87, 0.0
    %92 = vadd.xlane.f32.xlu0 %v91
    %v93 = vpop.xlane.xlu0 %92
    %v94 = vmul.f32 %v90, %v81
    %v95 = vmul.f32 %v93, %v81
    %v96 = vadd.f32 %v94, 1e-05
    %v97 = vadd.f32 %v95, 1e-05
    %v98 = vrsqrt.pop %v96
    %v99 = vrsqrt.pop %v97
    %v100 = vmul.f32 %v84, %v98
    %v101 = vmul.f32 %v85, %v99
    %v102 = vld [vmem:[%s3] sm:$0xff]
    %v103 = vld [vmem:[%s3 + $0x8] sm:$0xff]
    %v104 = vld [vmem:[%s3 + $0x10] sm:$0xff]
    %v105 = vld [vmem:[%s3 + $0x18] sm:$0xff]
    %v107 = vsel %vm74, %v100, 0
    %v110 = vsel %vm74, %v101, 0
    %112 = vmatprep.subr.mxu0 0.0
    %113 = vmatpush1.msra.mxu0 0.0
    %114 = vmatprep.subr.mxu0 0.0
    %115 = vmatpush1.msra.mxu0 0.0
    %116 = vmatprep.subr.mxu0 0.0
    %117 = vmatpush1.msra.mxu0 0.0
    %118 = vmatprep.subr.mxu0 0.0
    %119 = vmatpush1.msra.mxu0 0.0
    %120 = vmatprep.subr.mxu0 0.0
    %121 = vmatpush1.msra.mxu0 0.0
    %122 = vmatprep.subr.mxu0 0.0
    %123 = vmatpush1.msra.mxu0 0.0
    %124 = vmatprep.subr.mxu0 0.0
    %125 = vmatpush1.msra.mxu0 0.0
    %126 = vmatprep.subr.mxu0 0.0
    %127 = vmatpush1.msra.mxu0 0.0
    %128 = vmatprep.subr.mxu0 0.0
    %129 = vmatpush1.msra.mxu0 0.0
    %130 = vmatprep.subr.mxu0 0.0
    %131 = vmatpush1.msra.mxu0 0.0
    %132 = vmatprep.subr.mxu0 0.0
    %133 = vmatpush1.msra.mxu0 0.0
    %134 = vmatprep.subr.mxu0 0.0
    %135 = vmatpush1.msra.mxu0 0.0
    %136 = vmatprep.subr.mxu0 0.0
    %137 = vmatpush1.msra.mxu0 %v105
    %138 = vmatprep.subr.mxu0 0.0
    %139 = vmatpush1.msra.mxu0 %v104
    %140 = vmatprep.subr.mxu0 0.0
    %141 = vmatpush1.msra.mxu0 %v103
    %142 = vmatprep.subr.mxu0 0.0
    %143 = vmatpush1.msra.mxu0 %v102
    %144 = vmatprep.subr.mxu0 0.0
    %145 = vmatpush2.msra.mxu0 0.0
    %146 = vmatprep.subr.mxu0 0.0
    %147 = vmatpush2.msra.mxu0 0.0
    %148 = vmatprep.subr.mxu0 0.0
    %149 = vmatpush2.msra.mxu0 0.0
    %150 = vmatprep.subr.mxu0 0.0
    %151 = vmatpush2.msra.mxu0 0.0
    %152 = vmatprep.subr.mxu0 0.0
    %153 = vmatpush2.msra.mxu0 0.0
    %154 = vmatprep.subr.mxu0 0.0
    %155 = vmatpush2.msra.mxu0 0.0
    %156 = vmatprep.subr.mxu0 0.0
    %157 = vmatpush2.msra.mxu0 0.0
    %158 = vmatprep.subr.mxu0 0.0
    %159 = vmatpush2.msra.mxu0 0.0
    %160 = vmatprep.subr.mxu0 0.0
    %161 = vmatpush2.msra.mxu0 0.0
    %162 = vmatprep.subr.mxu0 0.0
    %163 = vmatpush2.msra.mxu0 0.0
    %164 = vmatprep.subr.mxu0 0.0
    %165 = vmatpush2.msra.mxu0 0.0
    %166 = vmatprep.subr.mxu0 0.0
    %167 = vmatpush2.msra.mxu0 0.0
    %168 = vmatprep.subr.mxu0 0.0
    %169 = vmatpush2.msra.mxu0 0.0
    %170 = vmatprep.subr.mxu0 0.0
    %171 = vmatpush2.msra.mxu0 0.0
    %172 = vmatprep.subr.mxu0 0.0
    %173 = vmatpush2.msra.mxu0 0.0
    %174 = vmatprep.subr.mxu0 0.0
    %175 = vmatpush2.msra.mxu0 0.0
    %176 = vmatprep.mubr.f32.mxu0 0.0
    %177 = vmatmul.mubr.f32.gmra.mxu0 %v107
    %v178 = vpop.f32.mrf.mxu0
    %v179 = vadd.f32 0.0, %v178
    %v180 = vpop.f32.mrf.mxu0
    %181 = vmatprep.mubr.f32.mxu0 0.0
    %182 = vmatmul.mubr.f32.gmra.mxu0 %v110
    %v183 = vpop.f32.mrf.mxu0
    %v184 = vadd.f32 0.0, %v183
    %v185 = vpop.f32.mrf.mxu0
    %186 = vdwg.mxu0
    %v187 = vlaneseq
    %v188 = vshrl.u32 %v187, 7
    %v189 = vsub.s32 0, %v188
    %v190 = vrot.slane %v69, %v189
    %v191 = vmul.f32 %v179, %v190
    %v192 = vmul.f32 %v184, %v190
    %v193 = vlaneseq
    %v194 = vshrl.u32 %v193, 7
    %v195 = vsub.s32 0, %v194
    %v196 = vrot.slane %v70, %v195
    %v197 = vadd.f32 %v191, %v196
    %v198 = vadd.f32 %v192, %v196
    %v199 = vld [vmem:[%s2 + $0x40] sm:$0xff]
    %v200 = vld [vmem:[%s2 + $0x48] sm:$0xff]
    %v201 = vrot.slane %v179, 7
    %v202 = vrot.slane %v184, 7
    %v203 = vlaneseq
    %v204 = vshrl.u32 %v203, 7
    %vm205 = vcmp.lt.s32.totalorder %v204, 1
    %v206 = vsel %vm205, %v201, %v202
    %v207 = vsel %vm205, %v202, %v201
    %v208 = vmul.f32 %v207, %v199
    %v209 = vmul.f32 %v206, %v200
    %v210 = vadd.f32 %v197, %v208
    %v211 = vadd.f32 %v198, %v209
    %v212 = vld [vmem:[%s2 + $0x50] sm:$0xff]
    %v213 = vld [vmem:[%s2 + $0x58] sm:$0xff]
    %v214 = vrot.slane %v179, 6
    %v215 = vrot.slane %v184, 6
    %vm216 = vcmp.lt.s32.totalorder %v204, 2
    %v217 = vsel %vm216, %v214, %v215
    %v218 = vsel %vm216, %v215, %v214
    %v219 = vmul.f32 %v218, %v212
    %v220 = vmul.f32 %v217, %v213
    %v221 = vadd.f32 %v210, %v219
    %v222 = vadd.f32 %v211, %v220
    %v223 = vld [vmem:[%s2 + $0x60] sm:$0xff]
    %v224 = vld [vmem:[%s2 + $0x68] sm:$0xff]
    %v225 = vrot.slane %v179, 5
    %v226 = vrot.slane %v184, 5
    %vm227 = vcmp.lt.s32.totalorder %v204, 3
    %v228 = vsel %vm227, %v225, %v226
    %v229 = vsel %vm227, %v226, %v225
    %v230 = vmul.f32 %v229, %v223
    %v231 = vmul.f32 %v228, %v224
    %v232 = vadd.f32 %v221, %v230
    %v233 = vadd.f32 %v222, %v231
    %v234 = vxor.u32 %v232, 2147483648
    %v235 = vxor.u32 %v233, 2147483648
    %v236 = vmul.f32 %v234, 1.442695
    %v237 = vpow.pop %v236
    %v238 = vmul.f32 %v235, 1.442695
    %v239 = vpow.pop %v238
    %v240 = vadd.f32 %v237, 1.0
    %v241 = vadd.f32 %v239, 1.0
    %v242 = vrcp.pop %v240
    %v243 = vmul.f32 1.0, %v242
    %v244 = vrcp.pop %v241
    %v245 = vmul.f32 1.0, %v244
    %v246 = vmul.f32 %v232, %v243
    %v247 = vmul.f32 %v233, %v245
    %v248 = vld [vmem:[%s4] sm:$0xff]
    %v249 = vld [vmem:[%s4 + $0x8] sm:$0xff]
    %v250 = vld [vmem:[%s4 + $0x10] sm:$0xff]
    %v251 = vld [vmem:[%s4 + $0x18] sm:$0xff]
    %v252 = vld [vmem:[%s4 + $0x20] sm:$0xff]
    %v253 = vld [vmem:[%s4 + $0x28] sm:$0xff]
    %v254 = vld [vmem:[%s4 + $0x30] sm:$0xff]
    %v255 = vld [vmem:[%s4 + $0x38] sm:$0xff]
    %v256 = vld [vmem:[%s4 + $0x40] sm:$0xff]
    %v257 = vld [vmem:[%s4 + $0x48] sm:$0xff]
    %v258 = vld [vmem:[%s4 + $0x50] sm:$0xff]
    %v259 = vld [vmem:[%s4 + $0x58] sm:$0xff]
    %v260 = vld [vmem:[%s4 + $0x60] sm:$0xff]
    %v261 = vld [vmem:[%s4 + $0x68] sm:$0xff]
    %v262 = vld [vmem:[%s4 + $0x70] sm:$0xff]
    %v263 = vld [vmem:[%s4 + $0x78] sm:$0xff]
    %vm264 = vcmask 523264
    %v266 = vsel %vm264, %v246, 0
    %v269 = vsel %vm264, %v247, 0
    %271 = vmatprep.subr.mxu0 0.0
    %272 = vmatpush1.msra.mxu0 0.0
    %273 = vmatprep.subr.mxu0 0.0
    %274 = vmatpush1.msra.mxu0 0.0
    %275 = vmatprep.subr.mxu0 0.0
    %276 = vmatpush1.msra.mxu0 0.0
    %277 = vmatprep.subr.mxu0 0.0
    %278 = vmatpush1.msra.mxu0 0.0
    %279 = vmatprep.subr.mxu0 0.0
    %280 = vmatpush1.msra.mxu0 0.0
    %281 = vmatprep.subr.mxu0 0.0
    %282 = vmatpush1.msra.mxu0 0.0
    %283 = vmatprep.subr.mxu0 0.0
    %284 = vmatpush1.msra.mxu0 0.0
    %285 = vmatprep.subr.mxu0 0.0
    %286 = vmatpush1.msra.mxu0 0.0
    %287 = vmatprep.subr.mxu0 %v263
    %288 = vmatpush1.msra.mxu0 %v262
    %289 = vmatprep.subr.mxu0 %v261
    %290 = vmatpush1.msra.mxu0 %v260
    %291 = vmatprep.subr.mxu0 %v259
    %292 = vmatpush1.msra.mxu0 %v258
    %293 = vmatprep.subr.mxu0 %v257
    %294 = vmatpush1.msra.mxu0 %v256
    %295 = vmatprep.subr.mxu0 %v255
    %296 = vmatpush1.msra.mxu0 %v254
    %297 = vmatprep.subr.mxu0 %v253
    %298 = vmatpush1.msra.mxu0 %v252
    %299 = vmatprep.subr.mxu0 %v251
    %300 = vmatpush1.msra.mxu0 %v250
    %301 = vmatprep.subr.mxu0 %v249
    %302 = vmatpush1.msra.mxu0 %v248
    %303 = vmatprep.subr.mxu0 0.0
    %304 = vmatpush2.msra.mxu0 0.0
    %305 = vmatprep.subr.mxu0 0.0
    %306 = vmatpush2.msra.mxu0 0.0
    %307 = vmatprep.subr.mxu0 0.0
    %308 = vmatpush2.msra.mxu0 0.0
    %309 = vmatprep.subr.mxu0 0.0
    %310 = vmatpush2.msra.mxu0 0.0
    %311 = vmatprep.subr.mxu0 0.0
    %312 = vmatpush2.msra.mxu0 0.0
    %313 = vmatprep.subr.mxu0 0.0
    %314 = vmatpush2.msra.mxu0 0.0
    %315 = vmatprep.subr.mxu0 0.0
    %316 = vmatpush2.msra.mxu0 0.0
    %317 = vmatprep.subr.mxu0 0.0
    %318 = vmatpush2.msra.mxu0 0.0
    %319 = vmatprep.subr.mxu0 0.0
    %320 = vmatpush2.msra.mxu0 0.0
    %321 = vmatprep.subr.mxu0 0.0
    %322 = vmatpush2.msra.mxu0 0.0
    %323 = vmatprep.subr.mxu0 0.0
    %324 = vmatpush2.msra.mxu0 0.0
    %325 = vmatprep.subr.mxu0 0.0
    %326 = vmatpush2.msra.mxu0 0.0
    %327 = vmatprep.subr.mxu0 0.0
    %328 = vmatpush2.msra.mxu0 0.0
    %329 = vmatprep.subr.mxu0 0.0
    %330 = vmatpush2.msra.mxu0 0.0
    %331 = vmatprep.subr.mxu0 0.0
    %332 = vmatpush2.msra.mxu0 0.0
    %333 = vmatprep.subr.mxu0 0.0
    %334 = vmatpush2.msra.mxu0 0.0
    %335 = vmatprep.mubr.f32.mxu0 0.0
    %336 = vmatmul.mubr.f32.gmra.mxu0 %v266
    %v337 = vpop.f32.mrf.mxu0
    %v338 = vadd.f32 0.0, %v337
    %v339 = vpop.f32.mrf.mxu0
    %v340 = vadd.f32 0.0, %v339
    %341 = vmatprep.mubr.f32.mxu0 0.0
    %342 = vmatmul.mubr.f32.gmra.mxu0 %v269
    %v343 = vpop.f32.mrf.mxu0
    %v344 = vadd.f32 0.0, %v343
    %v345 = vpop.f32.mrf.mxu0
    %v346 = vadd.f32 0.0, %v345
    %347 = vdwg.mxu0
    %v348 = vld [vmem:[%s5] sm:$0xff]
    %v349 = vld [vmem:[%s5 + $0x8] sm:$0xff]
    %v350 = vld [vmem:[%s5 + $0x10] sm:$0xff]
    %v351 = vld [vmem:[%s5 + $0x18] sm:$0xff]
    %v352 = vld [vmem:[%s5 + $0x20] sm:$0xff]
    %v353 = vld [vmem:[%s5 + $0x28] sm:$0xff]
    %v354 = vld [vmem:[%s5 + $0x30] sm:$0xff]
    %v355 = vld [vmem:[%s5 + $0x38] sm:$0xff]
    %v357 = vsel %vm264, %v179, 0
    %v360 = vsel %vm264, %v184, 0
    %362 = vmatprep.subr.mxu0 0.0
    %363 = vmatpush1.msra.mxu0 0.0
    %364 = vmatprep.subr.mxu0 0.0
    %365 = vmatpush1.msra.mxu0 0.0
    %366 = vmatprep.subr.mxu0 0.0
    %367 = vmatpush1.msra.mxu0 0.0
    %368 = vmatprep.subr.mxu0 0.0
    %369 = vmatpush1.msra.mxu0 0.0
    %370 = vmatprep.subr.mxu0 0.0
    %371 = vmatpush1.msra.mxu0 0.0
    %372 = vmatprep.subr.mxu0 0.0
    %373 = vmatpush1.msra.mxu0 0.0
    %374 = vmatprep.subr.mxu0 0.0
    %375 = vmatpush1.msra.mxu0 0.0
    %376 = vmatprep.subr.mxu0 0.0
    %377 = vmatpush1.msra.mxu0 0.0
    %378 = vmatprep.subr.mxu0 0.0
    %379 = vmatpush1.msra.mxu0 %v355
    %380 = vmatprep.subr.mxu0 0.0
    %381 = vmatpush1.msra.mxu0 %v354
    %382 = vmatprep.subr.mxu0 0.0
    %383 = vmatpush1.msra.mxu0 %v353
    %384 = vmatprep.subr.mxu0 0.0
    %385 = vmatpush1.msra.mxu0 %v352
    %386 = vmatprep.subr.mxu0 0.0
    %387 = vmatpush1.msra.mxu0 %v351
    %388 = vmatprep.subr.mxu0 0.0
    %389 = vmatpush1.msra.mxu0 %v350
    %390 = vmatprep.subr.mxu0 0.0
    %391 = vmatpush1.msra.mxu0 %v349
    %392 = vmatprep.subr.mxu0 0.0
    %393 = vmatpush1.msra.mxu0 %v348
    %394 = vmatprep.subr.mxu0 0.0
    %395 = vmatpush2.msra.mxu0 0.0
    %396 = vmatprep.subr.mxu0 0.0
    %397 = vmatpush2.msra.mxu0 0.0
    %398 = vmatprep.subr.mxu0 0.0
    %399 = vmatpush2.msra.mxu0 0.0
    %400 = vmatprep.subr.mxu0 0.0
    %401 = vmatpush2.msra.mxu0 0.0
    %402 = vmatprep.subr.mxu0 0.0
    %403 = vmatpush2.msra.mxu0 0.0
    %404 = vmatprep.subr.mxu0 0.0
    %405 = vmatpush2.msra.mxu0 0.0
    %406 = vmatprep.subr.mxu0 0.0
    %407 = vmatpush2.msra.mxu0 0.0
    %408 = vmatprep.subr.mxu0 0.0
    %409 = vmatpush2.msra.mxu0 0.0
    %410 = vmatprep.subr.mxu0 0.0
    %411 = vmatpush2.msra.mxu0 0.0
    %412 = vmatprep.subr.mxu0 0.0
    %413 = vmatpush2.msra.mxu0 0.0
    %414 = vmatprep.subr.mxu0 0.0
    %415 = vmatpush2.msra.mxu0 0.0
    %416 = vmatprep.subr.mxu0 0.0
    %417 = vmatpush2.msra.mxu0 0.0
    %418 = vmatprep.subr.mxu0 0.0
    %419 = vmatpush2.msra.mxu0 0.0
    %420 = vmatprep.subr.mxu0 0.0
    %421 = vmatpush2.msra.mxu0 0.0
    %422 = vmatprep.subr.mxu0 0.0
    %423 = vmatpush2.msra.mxu0 0.0
    %424 = vmatprep.subr.mxu0 0.0
    %425 = vmatpush2.msra.mxu0 0.0
    %426 = vmatprep.mubr.f32.mxu0 0.0
    %427 = vmatmul.mubr.f32.gmra.mxu0 %v357
    %v428 = vpop.f32.mrf.mxu0
    %v429 = vadd.f32 0.0, %v428
    %v430 = vpop.f32.mrf.mxu0
    %431 = vmatprep.mubr.f32.mxu0 0.0
    %432 = vmatmul.mubr.f32.gmra.mxu0 %v360
    %v433 = vpop.f32.mrf.mxu0
    %v434 = vadd.f32 0.0, %v433
    %v435 = vpop.f32.mrf.mxu0
    %436 = vdwg.mxu0
    %439 = vrot.lane.b32.xlu0 %v429, 64
    %v440 = vpop.permute.xlu0 %439
    %441 = vrot.lane.b32.xlu0 %v434, 64
    %v442 = vpop.permute.xlu0 %441
    %v445 = vadd.f32 %v340, %v440
    %v446 = vadd.f32 %v346, %v442
    %v447 = vlaneseq
    %v448 = vshrl.u32 %v447, 7
    %v449 = vsub.s32 0, %v448
    %v450 = vrot.slane %v73, %v449
    %v451 = vadd.f32 %v445, %v450
    %v452 = vadd.f32 %v446, %v450
    %v453 = vmin.f32 %v451, 0.0
    %v454 = vmin.f32 %v452, 0.0
    %v455 = vand.u32 2147483647, %v451
    %v456 = vand.u32 2147483647, %v452
    %v457 = vsub.f32 0.0, %v455
    %v458 = vsub.f32 0.0, %v456
    %v459 = vmul.f32 %v457, 1.442695
    %v460 = vpow.pop %v459
    %v461 = vmul.f32 %v458, 1.442695
    %v462 = vpow.pop %v461
    %v463 = vadd.f32 %v460, 1.0
    %v464 = vadd.f32 %v462, 1.0
    %v465 = vlog2.pop %v463
    %v466 = vmul.f32 %v465, 0.6931472
    %v467 = vlog2.pop %v464
    %v468 = vmul.f32 %v467, 0.6931472
    %v469 = vsub.f32 %v453, %v466
    %v470 = vsub.f32 %v454, %v468
    %473 = vrot.lane.b32.xlu0 %v469, 124
    %v474 = vpop.permute.xlu0 %473
    %475 = vrot.lane.b32.xlu0 %v470, 124
    %v476 = vpop.permute.xlu0 %475
    %vm479 = vcmask 130048
    %v481 = vsel %vm479, %v35, 0
    %v484 = vsel %vm479, %v36, 0
    %486 = vmatprep.subr.mxu0 0.0
    %487 = vmatpush1.msra.mxu0 0.0
    %488 = vmatprep.subr.mxu0 0.0
    %489 = vmatpush1.msra.mxu0 0.0
    %490 = vmatprep.subr.mxu0 0.0
    %491 = vmatpush1.msra.mxu0 0.0
    %492 = vmatprep.subr.mxu0 0.0
    %493 = vmatpush1.msra.mxu0 0.0
    %494 = vmatprep.subr.mxu0 0.0
    %495 = vmatpush1.msra.mxu0 0.0
    %496 = vmatprep.subr.mxu0 0.0
    %497 = vmatpush1.msra.mxu0 0.0
    %498 = vmatprep.subr.mxu0 0.0
    %499 = vmatpush1.msra.mxu0 0.0
    %500 = vmatprep.subr.mxu0 0.0
    %501 = vmatpush1.msra.mxu0 0.0
    %502 = vmatprep.subr.mxu0 0.0
    %503 = vmatpush1.msra.mxu0 0.0
    %504 = vmatprep.subr.mxu0 0.0
    %505 = vmatpush1.msra.mxu0 0.0
    %506 = vmatprep.subr.mxu0 0.0
    %507 = vmatpush1.msra.mxu0 0.0
    %508 = vmatprep.subr.mxu0 0.0
    %509 = vmatpush1.msra.mxu0 0.0
    %510 = vmatprep.subr.mxu0 0.0
    %511 = vmatpush1.msra.mxu0 0.0
    %512 = vmatprep.subr.mxu0 0.0
    %513 = vmatpush1.msra.mxu0 0.0
    %514 = vmatprep.subr.mxu0 0.0
    %515 = vmatpush1.msra.mxu0 %v476
    %516 = vmatprep.subr.mxu0 0.0
    %517 = vmatpush1.msra.mxu0 %v474
    %518 = vmatprep.subr.mxu0 0.0
    %519 = vmatpush2.msra.mxu0 0.0
    %520 = vmatprep.subr.mxu0 0.0
    %521 = vmatpush2.msra.mxu0 0.0
    %522 = vmatprep.subr.mxu0 0.0
    %523 = vmatpush2.msra.mxu0 0.0
    %524 = vmatprep.subr.mxu0 0.0
    %525 = vmatpush2.msra.mxu0 0.0
    %526 = vmatprep.subr.mxu0 0.0
    %527 = vmatpush2.msra.mxu0 0.0
    %528 = vmatprep.subr.mxu0 0.0
    %529 = vmatpush2.msra.mxu0 0.0
    %530 = vmatprep.subr.mxu0 0.0
    %531 = vmatpush2.msra.mxu0 0.0
    %532 = vmatprep.subr.mxu0 0.0
    %533 = vmatpush2.msra.mxu0 0.0
    %534 = vmatprep.subr.mxu0 0.0
    %535 = vmatpush2.msra.mxu0 0.0
    %536 = vmatprep.subr.mxu0 0.0
    %537 = vmatpush2.msra.mxu0 0.0
    %538 = vmatprep.subr.mxu0 0.0
    %539 = vmatpush2.msra.mxu0 0.0
    %540 = vmatprep.subr.mxu0 0.0
    %541 = vmatpush2.msra.mxu0 0.0
    %542 = vmatprep.subr.mxu0 0.0
    %543 = vmatpush2.msra.mxu0 0.0
    %544 = vmatprep.subr.mxu0 0.0
    %545 = vmatpush2.msra.mxu0 0.0
    %546 = vmatprep.subr.mxu0 0.0
    %547 = vmatpush2.msra.mxu0 0.0
    %548 = vmatprep.subr.mxu0 0.0
    %549 = vmatpush2.msra.mxu0 0.0
    %550 = vmatprep.mubr.f32.mxu0 0.0
    %551 = vmatmul.mubr.f32.gmra.mxu0 %v481
    %v552 = vpop.f32.mrf.mxu0
    %v553 = vadd.f32 0.0, %v552
    %v554 = vpop.f32.mrf.mxu0
    %555 = vmatprep.mubr.f32.mxu0 0.0
    %556 = vmatmul.mubr.f32.gmra.mxu0 %v484
    %v557 = vpop.f32.mrf.mxu0
    %v558 = vadd.f32 0.0, %v557
    %v559 = vpop.f32.mrf.mxu0
    %560 = vdwg.mxu0
    %v561 = vsub.f32 %v451, %v553
    %v562 = vsub.f32 %v452, %v558
    %v564 = vsel %vm479, %v45, 0
    %v567 = vsel %vm479, %v46, 0
    %v570 = vsel %vm479, %v47, 0
    %v573 = vsel %vm479, %v48, 0
    %v576 = vsel %vm479, %v49, 0
    %v579 = vsel %vm479, %v50, 0
    %v582 = vsel %vm479, %v51, 0
    %v585 = vsel %vm479, %v52, 0
    %587 = vmatprep.subr.mxu0 0.0
    %588 = vmatpush1.msra.mxu0 0.0
    %589 = vmatprep.subr.mxu0 0.0
    %590 = vmatpush1.msra.mxu0 0.0
    %591 = vmatprep.subr.mxu0 0.0
    %592 = vmatpush1.msra.mxu0 0.0
    %593 = vmatprep.subr.mxu0 0.0
    %594 = vmatpush1.msra.mxu0 0.0
    %595 = vmatprep.subr.mxu0 0.0
    %596 = vmatpush1.msra.mxu0 0.0
    %597 = vmatprep.subr.mxu0 0.0
    %598 = vmatpush1.msra.mxu0 0.0
    %599 = vmatprep.subr.mxu0 0.0
    %600 = vmatpush1.msra.mxu0 0.0
    %601 = vmatprep.subr.mxu0 0.0
    %602 = vmatpush1.msra.mxu0 0.0
    %603 = vmatprep.subr.mxu0 0.0
    %604 = vmatpush1.msra.mxu0 0.0
    %605 = vmatprep.subr.mxu0 0.0
    %606 = vmatpush1.msra.mxu0 0.0
    %607 = vmatprep.subr.mxu0 0.0
    %608 = vmatpush1.msra.mxu0 0.0
    %609 = vmatprep.subr.mxu0 0.0
    %610 = vmatpush1.msra.mxu0 0.0
    %611 = vmatprep.subr.mxu0 0.0
    %612 = vmatpush1.msra.mxu0 0.0
    %613 = vmatprep.subr.mxu0 0.0
    %614 = vmatpush1.msra.mxu0 0.0
    %615 = vmatprep.subr.mxu0 0.0
    %616 = vmatpush1.msra.mxu0 %v558
    %617 = vmatprep.subr.mxu0 0.0
    %618 = vmatpush1.msra.mxu0 %v553
    %619 = vmatprep.subr.mxu0 0.0
    %620 = vmatpush2.msra.mxu0 0.0
    %621 = vmatprep.subr.mxu0 0.0
    %622 = vmatpush2.msra.mxu0 0.0
    %623 = vmatprep.subr.mxu0 0.0
    %624 = vmatpush2.msra.mxu0 0.0
    %625 = vmatprep.subr.mxu0 0.0
    %626 = vmatpush2.msra.mxu0 0.0
    %627 = vmatprep.subr.mxu0 0.0
    %628 = vmatpush2.msra.mxu0 0.0
    %629 = vmatprep.subr.mxu0 0.0
    %630 = vmatpush2.msra.mxu0 0.0
    %631 = vmatprep.subr.mxu0 0.0
    %632 = vmatpush2.msra.mxu0 0.0
    %633 = vmatprep.subr.mxu0 0.0
    %634 = vmatpush2.msra.mxu0 0.0
    %635 = vmatprep.subr.mxu0 0.0
    %636 = vmatpush2.msra.mxu0 0.0
    %637 = vmatprep.subr.mxu0 0.0
    %638 = vmatpush2.msra.mxu0 0.0
    %639 = vmatprep.subr.mxu0 0.0
    %640 = vmatpush2.msra.mxu0 0.0
    %641 = vmatprep.subr.mxu0 0.0
    %642 = vmatpush2.msra.mxu0 0.0
    %643 = vmatprep.subr.mxu0 0.0
    %644 = vmatpush2.msra.mxu0 0.0
    %645 = vmatprep.subr.mxu0 0.0
    %646 = vmatpush2.msra.mxu0 0.0
    %647 = vmatprep.subr.mxu0 0.0
    %648 = vmatpush2.msra.mxu0 0.0
    %649 = vmatprep.subr.mxu0 0.0
    %650 = vmatpush2.msra.mxu0 0.0
    %651 = vmatprep.mubr.f32.mxu0 0.0
    %652 = vmatmul.mubr.f32.gmra.mxu0 %v564
    %v653 = vpop.f32.mrf.mxu0
    %v654 = vadd.f32 0.0, %v653
    %v655 = vpop.f32.mrf.mxu0
    %656 = vmatprep.mubr.f32.mxu0 0.0
    %657 = vmatmul.mubr.f32.gmra.mxu0 %v567
    %v658 = vpop.f32.mrf.mxu0
    %v659 = vadd.f32 0.0, %v658
    %v660 = vpop.f32.mrf.mxu0
    %661 = vmatprep.mubr.f32.mxu0 0.0
    %662 = vmatmul.mubr.f32.gmra.mxu0 %v570
    %v663 = vpop.f32.mrf.mxu0
    %v664 = vadd.f32 0.0, %v663
    %v665 = vpop.f32.mrf.mxu0
    %666 = vmatprep.mubr.f32.mxu0 0.0
    %667 = vmatmul.mubr.f32.gmra.mxu0 %v573
    %v668 = vpop.f32.mrf.mxu0
    %v669 = vadd.f32 0.0, %v668
    %v670 = vpop.f32.mrf.mxu0
    %671 = vmatprep.mubr.f32.mxu0 0.0
    %672 = vmatmul.mubr.f32.gmra.mxu0 %v576
    %v673 = vpop.f32.mrf.mxu0
    %v674 = vadd.f32 0.0, %v673
    %v675 = vpop.f32.mrf.mxu0
    %676 = vmatprep.mubr.f32.mxu0 0.0
    %677 = vmatmul.mubr.f32.gmra.mxu0 %v579
    %v678 = vpop.f32.mrf.mxu0
    %v679 = vadd.f32 0.0, %v678
    %v680 = vpop.f32.mrf.mxu0
    %681 = vmatprep.mubr.f32.mxu0 0.0
    %682 = vmatmul.mubr.f32.gmra.mxu0 %v582
    %v683 = vpop.f32.mrf.mxu0
    %v684 = vadd.f32 0.0, %v683
    %v685 = vpop.f32.mrf.mxu0
    %686 = vmatprep.mubr.f32.mxu0 0.0
    %687 = vmatmul.mubr.f32.gmra.mxu0 %v585
    %v688 = vpop.f32.mrf.mxu0
    %v689 = vadd.f32 0.0, %v688
    %v690 = vpop.f32.mrf.mxu0
    %691 = vdwg.mxu0
    %v692 = vmul.f32 %v654, %v53
    %v693 = vmul.f32 %v659, %v54
    %v694 = vmul.f32 %v664, %v55
    %v695 = vmul.f32 %v669, %v56
    %v696 = vmul.f32 %v674, %v57
    %v697 = vmul.f32 %v679, %v58
    %v698 = vmul.f32 %v684, %v59
    %v699 = vmul.f32 %v689, %v60
    %vm700 = vcmask 31744
    %v701 = vsel %vm700, %v692, 0.0
    %702 = vadd.xlane.f32.xlu0 %v701
    %v703 = vpop.xlane.xlu0 %702
    %v704 = vsel %vm700, %v693, 0.0
    %705 = vadd.xlane.f32.xlu0 %v704
    %v706 = vpop.xlane.xlu0 %705
    %v707 = vsel %vm700, %v694, 0.0
    %708 = vadd.xlane.f32.xlu0 %v707
    %v709 = vpop.xlane.xlu0 %708
    %v710 = vsel %vm700, %v695, 0.0
    %711 = vadd.xlane.f32.xlu0 %v710
    %v712 = vpop.xlane.xlu0 %711
    %v713 = vsel %vm700, %v696, 0.0
    %714 = vadd.xlane.f32.xlu0 %v713
    %v715 = vpop.xlane.xlu0 %714
    %v716 = vsel %vm700, %v697, 0.0
    %717 = vadd.xlane.f32.xlu0 %v716
    %v718 = vpop.xlane.xlu0 %717
    %v719 = vsel %vm700, %v698, 0.0
    %720 = vadd.xlane.f32.xlu0 %v719
    %v721 = vpop.xlane.xlu0 %720
    %v722 = vsel %vm700, %v699, 0.0
    %723 = vadd.xlane.f32.xlu0 %v722
    %v724 = vpop.xlane.xlu0 %723
    %v726 = vsel %vm700, %v53, 0
    %v729 = vsel %vm700, %v54, 0
    %v732 = vsel %vm700, %v55, 0
    %v735 = vsel %vm700, %v56, 0
    %v738 = vsel %vm700, %v57, 0
    %v741 = vsel %vm700, %v58, 0
    %v744 = vsel %vm700, %v59, 0
    %v747 = vsel %vm700, %v60, 0
    %v750 = vsel %vm700, %v561, 0
    %v753 = vsel %vm700, %v562, 0
    %755 = vmatprep.subr.mxu0 0.0
    %756 = vmatpush1.xpose.msra.mxu0 0.0
    %757 = vmatprep.subr.mxu0 0.0
    %758 = vmatpush1.xpose.msra.mxu0 0.0
    %759 = vmatprep.subr.mxu0 0.0
    %760 = vmatpush1.xpose.msra.mxu0 0.0
    %761 = vmatprep.subr.mxu0 0.0
    %762 = vmatpush1.xpose.msra.mxu0 0.0
    %763 = vmatprep.subr.mxu0 0.0
    %764 = vmatpush1.xpose.msra.mxu0 0.0
    %765 = vmatprep.subr.mxu0 0.0
    %766 = vmatpush1.xpose.msra.mxu0 0.0
    %767 = vmatprep.subr.mxu0 0.0
    %768 = vmatpush1.xpose.msra.mxu0 0.0
    %769 = vmatprep.subr.mxu0 0.0
    %770 = vmatpush1.xpose.msra.mxu0 0.0
    %771 = vmatprep.subr.mxu0 0.0
    %772 = vmatpush1.xpose.msra.mxu0 0.0
    %773 = vmatprep.subr.mxu0 0.0
    %774 = vmatpush1.xpose.msra.mxu0 0.0
    %775 = vmatprep.subr.mxu0 0.0
    %776 = vmatpush1.xpose.msra.mxu0 0.0
    %777 = vmatprep.subr.mxu0 0.0
    %778 = vmatpush1.xpose.msra.mxu0 0.0
    %779 = vmatprep.subr.mxu0 0.0
    %780 = vmatpush1.xpose.msra.mxu0 0.0
    %781 = vmatprep.subr.mxu0 0.0
    %782 = vmatpush1.xpose.msra.mxu0 0.0
    %783 = vmatprep.subr.mxu0 0.0
    %784 = vmatpush1.xpose.msra.mxu0 %v753
    %785 = vmatprep.subr.mxu0 0.0
    %786 = vmatpush1.xpose.msra.mxu0 %v750
    %787 = vmatprep.subr.mxu0 0.0
    %788 = vmatpush2.xpose.msra.mxu0 0.0
    %789 = vmatprep.subr.mxu0 0.0
    %790 = vmatpush2.xpose.msra.mxu0 0.0
    %791 = vmatprep.subr.mxu0 0.0
    %792 = vmatpush2.xpose.msra.mxu0 0.0
    %793 = vmatprep.subr.mxu0 0.0
    %794 = vmatpush2.xpose.msra.mxu0 0.0
    %795 = vmatprep.subr.mxu0 0.0
    %796 = vmatpush2.xpose.msra.mxu0 0.0
    %797 = vmatprep.subr.mxu0 0.0
    %798 = vmatpush2.xpose.msra.mxu0 0.0
    %799 = vmatprep.subr.mxu0 0.0
    %800 = vmatpush2.xpose.msra.mxu0 0.0
    %801 = vmatprep.subr.mxu0 0.0
    %802 = vmatpush2.xpose.msra.mxu0 0.0
    %803 = vmatprep.subr.mxu0 0.0
    %804 = vmatpush2.xpose.msra.mxu0 0.0
    %805 = vmatprep.subr.mxu0 0.0
    %806 = vmatpush2.xpose.msra.mxu0 0.0
    %807 = vmatprep.subr.mxu0 0.0
    %808 = vmatpush2.xpose.msra.mxu0 0.0
    %809 = vmatprep.subr.mxu0 0.0
    %810 = vmatpush2.xpose.msra.mxu0 0.0
    %811 = vmatprep.subr.mxu0 0.0
    %812 = vmatpush2.xpose.msra.mxu0 0.0
    %813 = vmatprep.subr.mxu0 0.0
    %814 = vmatpush2.xpose.msra.mxu0 0.0
    %815 = vmatprep.subr.mxu0 0.0
    %816 = vmatpush2.xpose.msra.mxu0 0.0
    %817 = vmatprep.subr.mxu0 0.0
    %818 = vmatpush2.xpose.msra.mxu0 0.0
    %819 = vmatprep.mubr.f32.mxu0 0.0
    %820 = vmatmul.mubr.f32.gmra.mxu0 %v726
    %v821 = vpop.f32.mrf.mxu0
    %v822 = vadd.f32 0.0, %v821
    %v823 = vpop.f32.mrf.mxu0
    %824 = vmatprep.mubr.f32.mxu0 0.0
    %825 = vmatmul.mubr.f32.gmra.mxu0 %v729
    %v826 = vpop.f32.mrf.mxu0
    %v827 = vadd.f32 0.0, %v826
    %v828 = vpop.f32.mrf.mxu0
    %829 = vmatprep.mubr.f32.mxu0 0.0
    %830 = vmatmul.mubr.f32.gmra.mxu0 %v732
    %v831 = vpop.f32.mrf.mxu0
    %v832 = vadd.f32 0.0, %v831
    %v833 = vpop.f32.mrf.mxu0
    %834 = vmatprep.mubr.f32.mxu0 0.0
    %835 = vmatmul.mubr.f32.gmra.mxu0 %v735
    %v836 = vpop.f32.mrf.mxu0
    %v837 = vadd.f32 0.0, %v836
    %v838 = vpop.f32.mrf.mxu0
    %839 = vmatprep.mubr.f32.mxu0 0.0
    %840 = vmatmul.mubr.f32.gmra.mxu0 %v738
    %v841 = vpop.f32.mrf.mxu0
    %v842 = vadd.f32 0.0, %v841
    %v843 = vpop.f32.mrf.mxu0
    %844 = vmatprep.mubr.f32.mxu0 0.0
    %845 = vmatmul.mubr.f32.gmra.mxu0 %v741
    %v846 = vpop.f32.mrf.mxu0
    %v847 = vadd.f32 0.0, %v846
    %v848 = vpop.f32.mrf.mxu0
    %849 = vmatprep.mubr.f32.mxu0 0.0
    %850 = vmatmul.mubr.f32.gmra.mxu0 %v744
    %v851 = vpop.f32.mrf.mxu0
    %v852 = vadd.f32 0.0, %v851
    %v853 = vpop.f32.mrf.mxu0
    %854 = vmatprep.mubr.f32.mxu0 0.0
    %855 = vmatmul.mubr.f32.gmra.mxu0 %v747
    %v856 = vpop.f32.mrf.mxu0
    %v857 = vadd.f32 0.0, %v856
    %v858 = vpop.f32.mrf.mxu0
    %859 = vdwg.mxu0
    %v860 = vadd.f32 %v703, %v822
    %v861 = vadd.f32 %v706, %v827
    %v862 = vadd.f32 %v709, %v832
    %v863 = vadd.f32 %v712, %v837
    %v864 = vadd.f32 %v715, %v842
    %v865 = vadd.f32 %v718, %v847
    %v866 = vadd.f32 %v721, %v852
    %v867 = vadd.f32 %v724, %v857
    %v868 = vadd.f32 %v860, %v37
    %v869 = vadd.f32 %v861, %v38
    %v870 = vadd.f32 %v862, %v39
    %v871 = vadd.f32 %v863, %v40
    %v872 = vadd.f32 %v864, %v41
    %v873 = vadd.f32 %v865, %v42
    %v874 = vadd.f32 %v866, %v43
    %v875 = vadd.f32 %v867, %v44
    %v876 = vsel %vm479, %v868, -inf
    %877 = vmax.xlane.f32.xlu0 %v876
    %v878 = vpop.xlane.xlu0 %877
    %v879 = vsel %vm479, %v869, -inf
    %880 = vmax.xlane.f32.xlu0 %v879
    %v881 = vpop.xlane.xlu0 %880
    %v882 = vsel %vm479, %v870, -inf
    %883 = vmax.xlane.f32.xlu0 %v882
    %v884 = vpop.xlane.xlu0 %883
    %v885 = vsel %vm479, %v871, -inf
    %886 = vmax.xlane.f32.xlu0 %v885
    %v887 = vpop.xlane.xlu0 %886
    %v888 = vsel %vm479, %v872, -inf
    %889 = vmax.xlane.f32.xlu0 %v888
    %v890 = vpop.xlane.xlu0 %889
    %v891 = vsel %vm479, %v873, -inf
    %892 = vmax.xlane.f32.xlu0 %v891
    %v893 = vpop.xlane.xlu0 %892
    %v894 = vsel %vm479, %v874, -inf
    %895 = vmax.xlane.f32.xlu0 %v894
    %v896 = vpop.xlane.xlu0 %895
    %v897 = vsel %vm479, %v875, -inf
    %898 = vmax.xlane.f32.xlu0 %v897
    %v899 = vpop.xlane.xlu0 %898
    %v900 = vsub.f32 %v868, %v878
    %v901 = vsub.f32 %v869, %v881
    %v902 = vsub.f32 %v870, %v884
    %v903 = vsub.f32 %v871, %v887
    %v904 = vsub.f32 %v872, %v890
    %v905 = vsub.f32 %v873, %v893
    %v906 = vsub.f32 %v874, %v896
    %v907 = vsub.f32 %v875, %v899
    %v908 = vmul.f32 %v900, 1.442695
    %v909 = vpow.pop %v908
    %v910 = vmul.f32 %v901, 1.442695
    %v911 = vpow.pop %v910
    %v912 = vmul.f32 %v902, 1.442695
    %v913 = vpow.pop %v912
    %v914 = vmul.f32 %v903, 1.442695
    %v915 = vpow.pop %v914
    %v916 = vmul.f32 %v904, 1.442695
    %v917 = vpow.pop %v916
    %v918 = vmul.f32 %v905, 1.442695
    %v919 = vpow.pop %v918
    %v920 = vmul.f32 %v906, 1.442695
    %v921 = vpow.pop %v920
    %v922 = vmul.f32 %v907, 1.442695
    %v923 = vpow.pop %v922
    %924 = vmatprep.subr.mxu0 0.0
    %925 = vmatpush1.msra.mxu0 0.0
    %926 = vmatprep.subr.mxu0 0.0
    %927 = vmatpush1.msra.mxu0 0.0
    %928 = vmatprep.subr.mxu0 0.0
    %929 = vmatpush1.msra.mxu0 0.0
    %930 = vmatprep.subr.mxu0 0.0
    %931 = vmatpush1.msra.mxu0 0.0
    %932 = vmatprep.subr.mxu0 0.0
    %933 = vmatpush1.msra.mxu0 0.0
    %934 = vmatprep.subr.mxu0 0.0
    %935 = vmatpush1.msra.mxu0 0.0
    %936 = vmatprep.subr.mxu0 0.0
    %937 = vmatpush1.msra.mxu0 0.0
    %938 = vmatprep.subr.mxu0 0.0
    %939 = vmatpush1.msra.mxu0 0.0
    %940 = vmatprep.subr.mxu0 0.0
    %941 = vmatpush1.msra.mxu0 0.0
    %942 = vmatprep.subr.mxu0 0.0
    %943 = vmatpush1.msra.mxu0 0.0
    %944 = vmatprep.subr.mxu0 0.0
    %945 = vmatpush1.msra.mxu0 0.0
    %946 = vmatprep.subr.mxu0 0.0
    %947 = vmatpush1.msra.mxu0 0.0
    %948 = vmatprep.subr.mxu0 0.0
    %949 = vmatpush1.msra.mxu0 0.0
    %950 = vmatprep.subr.mxu0 0.0
    %951 = vmatpush1.msra.mxu0 0.0
    %952 = vmatprep.subr.mxu0 0.0
    %953 = vmatpush1.msra.mxu0 %v344
    %954 = vmatprep.subr.mxu0 0.0
    %955 = vmatpush1.msra.mxu0 %v338
    %956 = vmatprep.subr.mxu0 0.0
    %957 = vmatpush2.msra.mxu0 0.0
    %958 = vmatprep.subr.mxu0 0.0
    %959 = vmatpush2.msra.mxu0 0.0
    %960 = vmatprep.subr.mxu0 0.0
    %961 = vmatpush2.msra.mxu0 0.0
    %962 = vmatprep.subr.mxu0 0.0
    %963 = vmatpush2.msra.mxu0 0.0
    %964 = vmatprep.subr.mxu0 0.0
    %965 = vmatpush2.msra.mxu0 0.0
    %966 = vmatprep.subr.mxu0 0.0
    %967 = vmatpush2.msra.mxu0 0.0
    %968 = vmatprep.subr.mxu0 0.0
    %969 = vmatpush2.msra.mxu0 0.0
    %970 = vmatprep.subr.mxu0 0.0
    %971 = vmatpush2.msra.mxu0 0.0
    %972 = vmatprep.subr.mxu0 0.0
    %973 = vmatpush2.msra.mxu0 0.0
    %974 = vmatprep.subr.mxu0 0.0
    %975 = vmatpush2.msra.mxu0 0.0
    %976 = vmatprep.subr.mxu0 0.0
    %977 = vmatpush2.msra.mxu0 0.0
    %978 = vmatprep.subr.mxu0 0.0
    %979 = vmatpush2.msra.mxu0 0.0
    %980 = vmatprep.subr.mxu0 0.0
    %981 = vmatpush2.msra.mxu0 0.0
    %982 = vmatprep.subr.mxu0 0.0
    %983 = vmatpush2.msra.mxu0 0.0
    %984 = vmatprep.subr.mxu0 0.0
    %985 = vmatpush2.msra.mxu0 0.0
    %986 = vmatprep.subr.mxu0 0.0
    %987 = vmatpush2.msra.mxu0 0.0
    %988 = vmatprep.mubr.f32.mxu0 0.0
    %989 = vmatmul.mubr.f32.gmra.mxu0 %v564
    %v990 = vpop.f32.mrf.mxu0
    %v991 = vadd.f32 0.0, %v990
    %v992 = vpop.f32.mrf.mxu0
    %993 = vmatprep.mubr.f32.mxu0 0.0
    %994 = vmatmul.mubr.f32.gmra.mxu0 %v567
    %v995 = vpop.f32.mrf.mxu0
    %v996 = vadd.f32 0.0, %v995
    %v997 = vpop.f32.mrf.mxu0
    %998 = vmatprep.mubr.f32.mxu0 0.0
    %999 = vmatmul.mubr.f32.gmra.mxu0 %v570
    %v1000 = vpop.f32.mrf.mxu0
    %v1001 = vadd.f32 0.0, %v1000
    %v1002 = vpop.f32.mrf.mxu0
    %1003 = vmatprep.mubr.f32.mxu0 0.0
    %1004 = vmatmul.mubr.f32.gmra.mxu0 %v573
    %v1005 = vpop.f32.mrf.mxu0
    %v1006 = vadd.f32 0.0, %v1005
    %v1007 = vpop.f32.mrf.mxu0
    %1008 = vmatprep.mubr.f32.mxu0 0.0
    %1009 = vmatmul.mubr.f32.gmra.mxu0 %v576
    %v1010 = vpop.f32.mrf.mxu0
    %v1011 = vadd.f32 0.0, %v1010
    %v1012 = vpop.f32.mrf.mxu0
    %1013 = vmatprep.mubr.f32.mxu0 0.0
    %1014 = vmatmul.mubr.f32.gmra.mxu0 %v579
    %v1015 = vpop.f32.mrf.mxu0
    %v1016 = vadd.f32 0.0, %v1015
    %v1017 = vpop.f32.mrf.mxu0
    %1018 = vmatprep.mubr.f32.mxu0 0.0
    %1019 = vmatmul.mubr.f32.gmra.mxu0 %v582
    %v1020 = vpop.f32.mrf.mxu0
    %v1021 = vadd.f32 0.0, %v1020
    %v1022 = vpop.f32.mrf.mxu0
    %1023 = vmatprep.mubr.f32.mxu0 0.0
    %1024 = vmatmul.mubr.f32.gmra.mxu0 %v585
    %v1025 = vpop.f32.mrf.mxu0
    %v1026 = vadd.f32 0.0, %v1025
    %v1027 = vpop.f32.mrf.mxu0
    %1028 = vdwg.mxu0
    %v1029 = vmul.f32 %v991, %v61
    %v1030 = vmul.f32 %v996, %v62
    %v1031 = vmul.f32 %v1001, %v63
    %v1032 = vmul.f32 %v1006, %v64
    %v1033 = vmul.f32 %v1011, %v65
    %v1034 = vmul.f32 %v1016, %v66
    %v1035 = vmul.f32 %v1021, %v67
    %v1036 = vmul.f32 %v1026, %v68
    %1039 = vrot.lane.b32.xlu0 %v338, 64
    %v1040 = vpop.permute.xlu0 %1039
    %1041 = vrot.lane.b32.xlu0 %v344, 64
    %v1042 = vpop.permute.xlu0 %1041
    %v1044 = vsel %vm264, %v1029, 0
    %v1047 = vsel %vm264, %v1030, 0
    %v1050 = vsel %vm264, %v1031, 0
    %v1053 = vsel %vm264, %v1032, 0
    %v1056 = vsel %vm264, %v1033, 0
    %v1059 = vsel %vm264, %v1034, 0
    %v1062 = vsel %vm264, %v1035, 0
    %v1065 = vsel %vm264, %v1036, 0
    %v1067 = vsel %vm264, %v1040, 0
    %v1069 = vsel %vm264, %v1042, 0
    %1071 = vmatprep.subr.mxu0 0.0
    %1072 = vmatpush1.xpose.msra.mxu0 0.0
    %1073 = vmatprep.subr.mxu0 0.0
    %1074 = vmatpush1.xpose.msra.mxu0 0.0
    %1075 = vmatprep.subr.mxu0 0.0
    %1076 = vmatpush1.xpose.msra.mxu0 0.0
    %1077 = vmatprep.subr.mxu0 0.0
    %1078 = vmatpush1.xpose.msra.mxu0 0.0
    %1079 = vmatprep.subr.mxu0 0.0
    %1080 = vmatpush1.xpose.msra.mxu0 0.0
    %1081 = vmatprep.subr.mxu0 0.0
    %1082 = vmatpush1.xpose.msra.mxu0 0.0
    %1083 = vmatprep.subr.mxu0 0.0
    %1084 = vmatpush1.xpose.msra.mxu0 0.0
    %1085 = vmatprep.subr.mxu0 0.0
    %1086 = vmatpush1.xpose.msra.mxu0 0.0
    %1087 = vmatprep.subr.mxu0 0.0
    %1088 = vmatpush1.xpose.msra.mxu0 0.0
    %1089 = vmatprep.subr.mxu0 0.0
    %1090 = vmatpush1.xpose.msra.mxu0 0.0
    %1091 = vmatprep.subr.mxu0 0.0
    %1092 = vmatpush1.xpose.msra.mxu0 0.0
    %1093 = vmatprep.subr.mxu0 0.0
    %1094 = vmatpush1.xpose.msra.mxu0 0.0
    %1095 = vmatprep.subr.mxu0 0.0
    %1096 = vmatpush1.xpose.msra.mxu0 0.0
    %1097 = vmatprep.subr.mxu0 0.0
    %1098 = vmatpush1.xpose.msra.mxu0 0.0
    %1099 = vmatprep.subr.mxu0 0.0
    %1100 = vmatpush1.xpose.msra.mxu0 %v1069
    %1101 = vmatprep.subr.mxu0 0.0
    %1102 = vmatpush1.xpose.msra.mxu0 %v1067
    %1103 = vmatprep.subr.mxu0 0.0
    %1104 = vmatpush2.xpose.msra.mxu0 0.0
    %1105 = vmatprep.subr.mxu0 0.0
    %1106 = vmatpush2.xpose.msra.mxu0 0.0
    %1107 = vmatprep.subr.mxu0 0.0
    %1108 = vmatpush2.xpose.msra.mxu0 0.0
    %1109 = vmatprep.subr.mxu0 0.0
    %1110 = vmatpush2.xpose.msra.mxu0 0.0
    %1111 = vmatprep.subr.mxu0 0.0
    %1112 = vmatpush2.xpose.msra.mxu0 0.0
    %1113 = vmatprep.subr.mxu0 0.0
    %1114 = vmatpush2.xpose.msra.mxu0 0.0
    %1115 = vmatprep.subr.mxu0 0.0
    %1116 = vmatpush2.xpose.msra.mxu0 0.0
    %1117 = vmatprep.subr.mxu0 0.0
    %1118 = vmatpush2.xpose.msra.mxu0 0.0
    %1119 = vmatprep.subr.mxu0 0.0
    %1120 = vmatpush2.xpose.msra.mxu0 0.0
    %1121 = vmatprep.subr.mxu0 0.0
    %1122 = vmatpush2.xpose.msra.mxu0 0.0
    %1123 = vmatprep.subr.mxu0 0.0
    %1124 = vmatpush2.xpose.msra.mxu0 0.0
    %1125 = vmatprep.subr.mxu0 0.0
    %1126 = vmatpush2.xpose.msra.mxu0 0.0
    %1127 = vmatprep.subr.mxu0 0.0
    %1128 = vmatpush2.xpose.msra.mxu0 0.0
    %1129 = vmatprep.subr.mxu0 0.0
    %1130 = vmatpush2.xpose.msra.mxu0 0.0
    %1131 = vmatprep.subr.mxu0 0.0
    %1132 = vmatpush2.xpose.msra.mxu0 0.0
    %1133 = vmatprep.subr.mxu0 0.0
    %1134 = vmatpush2.xpose.msra.mxu0 0.0
    %1135 = vmatprep.mubr.f32.mxu0 0.0
    %1136 = vmatmul.mubr.f32.gmra.mxu0 %v1044
    %v1137 = vpop.f32.mrf.mxu0
    %v1138 = vadd.f32 0.0, %v1137
    %v1139 = vpop.f32.mrf.mxu0
    %1140 = vmatprep.mubr.f32.mxu0 0.0
    %1141 = vmatmul.mubr.f32.gmra.mxu0 %v1047
    %v1142 = vpop.f32.mrf.mxu0
    %v1143 = vadd.f32 0.0, %v1142
    %v1144 = vpop.f32.mrf.mxu0
    %1145 = vmatprep.mubr.f32.mxu0 0.0
    %1146 = vmatmul.mubr.f32.gmra.mxu0 %v1050
    %v1147 = vpop.f32.mrf.mxu0
    %v1148 = vadd.f32 0.0, %v1147
    %v1149 = vpop.f32.mrf.mxu0
    %1150 = vmatprep.mubr.f32.mxu0 0.0
    %1151 = vmatmul.mubr.f32.gmra.mxu0 %v1053
    %v1152 = vpop.f32.mrf.mxu0
    %v1153 = vadd.f32 0.0, %v1152
    %v1154 = vpop.f32.mrf.mxu0
    %1155 = vmatprep.mubr.f32.mxu0 0.0
    %1156 = vmatmul.mubr.f32.gmra.mxu0 %v1056
    %v1157 = vpop.f32.mrf.mxu0
    %v1158 = vadd.f32 0.0, %v1157
    %v1159 = vpop.f32.mrf.mxu0
    %1160 = vmatprep.mubr.f32.mxu0 0.0
    %1161 = vmatmul.mubr.f32.gmra.mxu0 %v1059
    %v1162 = vpop.f32.mrf.mxu0
    %v1163 = vadd.f32 0.0, %v1162
    %v1164 = vpop.f32.mrf.mxu0
    %1165 = vmatprep.mubr.f32.mxu0 0.0
    %1166 = vmatmul.mubr.f32.gmra.mxu0 %v1062
    %v1167 = vpop.f32.mrf.mxu0
    %v1168 = vadd.f32 0.0, %v1167
    %v1169 = vpop.f32.mrf.mxu0
    %1170 = vmatprep.mubr.f32.mxu0 0.0
    %1171 = vmatmul.mubr.f32.gmra.mxu0 %v1065
    %v1172 = vpop.f32.mrf.mxu0
    %v1173 = vadd.f32 0.0, %v1172
    %v1174 = vpop.f32.mrf.mxu0
    %1175 = vdwg.mxu0
    %v1176 = vmul.f32 %v1138, %v909
    %v1177 = vmul.f32 %v1143, %v911
    %v1178 = vmul.f32 %v1148, %v913
    %v1179 = vmul.f32 %v1153, %v915
    %v1180 = vmul.f32 %v1158, %v917
    %v1181 = vmul.f32 %v1163, %v919
    %v1182 = vmul.f32 %v1168, %v921
    %v1183 = vmul.f32 %v1173, %v923
    %v1184 = vsel %vm479, %v1176, 0.0
    %1185 = vadd.xlane.f32.xlu0 %v1184
    %v1186 = vpop.xlane.xlu0 %1185
    %v1187 = vsel %vm479, %v1177, 0.0
    %1188 = vadd.xlane.f32.xlu0 %v1187
    %v1189 = vpop.xlane.xlu0 %1188
    %v1190 = vsel %vm479, %v1178, 0.0
    %1191 = vadd.xlane.f32.xlu0 %v1190
    %v1192 = vpop.xlane.xlu0 %1191
    %v1193 = vsel %vm479, %v1179, 0.0
    %1194 = vadd.xlane.f32.xlu0 %v1193
    %v1195 = vpop.xlane.xlu0 %1194
    %v1196 = vsel %vm479, %v1180, 0.0
    %1197 = vadd.xlane.f32.xlu0 %v1196
    %v1198 = vpop.xlane.xlu0 %1197
    %v1199 = vsel %vm479, %v1181, 0.0
    %1200 = vadd.xlane.f32.xlu0 %v1199
    %v1201 = vpop.xlane.xlu0 %1200
    %v1202 = vsel %vm479, %v1182, 0.0
    %1203 = vadd.xlane.f32.xlu0 %v1202
    %v1204 = vpop.xlane.xlu0 %1203
    %v1205 = vsel %vm479, %v1183, 0.0
    %1206 = vadd.xlane.f32.xlu0 %v1205
    %v1207 = vpop.xlane.xlu0 %1206
    %v1208 = vand.u32 2147483647, %v1186
    %v1209 = vand.u32 2147483647, %v1189
    %v1210 = vand.u32 2147483647, %v1192
    %v1211 = vand.u32 2147483647, %v1195
    %v1212 = vand.u32 2147483647, %v1198
    %v1213 = vand.u32 2147483647, %v1201
    %v1214 = vand.u32 2147483647, %v1204
    %v1215 = vand.u32 2147483647, %v1207
    %v1216 = vsub.f32 0.0, %v878
    %v1217 = vsub.f32 0.0, %v881
    %v1218 = vsub.f32 0.0, %v884
    %v1219 = vsub.f32 0.0, %v887
    %v1220 = vsub.f32 0.0, %v890
    %v1221 = vsub.f32 0.0, %v893
    %v1222 = vsub.f32 0.0, %v896
    %v1223 = vsub.f32 0.0, %v899
    %v1224 = vmul.f32 %v1216, 1.442695
    %v1225 = vpow.pop %v1224
    %v1226 = vmul.f32 %v1217, 1.442695
    %v1227 = vpow.pop %v1226
    %v1228 = vmul.f32 %v1218, 1.442695
    %v1229 = vpow.pop %v1228
    %v1230 = vmul.f32 %v1219, 1.442695
    %v1231 = vpow.pop %v1230
    %v1232 = vmul.f32 %v1220, 1.442695
    %v1233 = vpow.pop %v1232
    %v1234 = vmul.f32 %v1221, 1.442695
    %v1235 = vpow.pop %v1234
    %v1236 = vmul.f32 %v1222, 1.442695
    %v1237 = vpow.pop %v1236
    %v1238 = vmul.f32 %v1223, 1.442695
    %v1239 = vpow.pop %v1238
    %v1240 = vmax.f32 %v1208, %v1225
    %v1241 = vmax.f32 %v1209, %v1227
    %v1242 = vmax.f32 %v1210, %v1229
    %v1243 = vmax.f32 %v1211, %v1231
    %v1244 = vmax.f32 %v1212, %v1233
    %v1245 = vmax.f32 %v1213, %v1235
    %v1246 = vmax.f32 %v1214, %v1237
    %v1247 = vmax.f32 %v1215, %v1239
    %v1248 = vadd.f32 %v1240, 1e-06
    %v1249 = vadd.f32 %v1241, 1e-06
    %v1250 = vadd.f32 %v1242, 1e-06
    %v1251 = vadd.f32 %v1243, 1e-06
    %v1252 = vadd.f32 %v1244, 1e-06
    %v1253 = vadd.f32 %v1245, 1e-06
    %v1254 = vadd.f32 %v1246, 1e-06
    %v1255 = vadd.f32 %v1247, 1e-06
    %v1256 = vrcp.pop %v1248
    %v1257 = vrcp.pop %v1249
    %v1258 = vrcp.pop %v1250
    %v1259 = vrcp.pop %v1251
    %v1260 = vrcp.pop %v1252
    %v1261 = vrcp.pop %v1253
    %v1262 = vrcp.pop %v1254
    %v1263 = vrcp.pop %v1255
    %v1264 = vmul.f32 %v1176, %v1256
    %v1265 = vmul.f32 %v1177, %v1257
    %v1266 = vmul.f32 %v1178, %v1258
    %v1267 = vmul.f32 %v1179, %v1259
    %v1268 = vmul.f32 %v1180, %v1260
    %v1269 = vmul.f32 %v1181, %v1261
    %v1270 = vmul.f32 %v1182, %v1262
    %v1271 = vmul.f32 %v1183, %v1263
    %v1273 = vsel %vm479, %v1264, 0
    %v1276 = vsel %vm479, %v1265, 0
    %v1279 = vsel %vm479, %v1266, 0
    %v1282 = vsel %vm479, %v1267, 0
    %v1285 = vsel %vm479, %v1268, 0
    %v1288 = vsel %vm479, %v1269, 0
    %v1291 = vsel %vm479, %v1270, 0
    %v1294 = vsel %vm479, %v1271, 0
    %1296 = vmatprep.subr.mxu0 0.0
    %1297 = vmatpush1.msra.mxu0 0.0
    %1298 = vmatprep.subr.mxu0 0.0
    %1299 = vmatpush1.msra.mxu0 0.0
    %1300 = vmatprep.subr.mxu0 0.0
    %1301 = vmatpush1.msra.mxu0 0.0
    %1302 = vmatprep.subr.mxu0 0.0
    %1303 = vmatpush1.msra.mxu0 0.0
    %1304 = vmatprep.subr.mxu0 0.0
    %1305 = vmatpush1.msra.mxu0 0.0
    %1306 = vmatprep.subr.mxu0 0.0
    %1307 = vmatpush1.msra.mxu0 0.0
    %1308 = vmatprep.subr.mxu0 0.0
    %1309 = vmatpush1.msra.mxu0 0.0
    %1310 = vmatprep.subr.mxu0 0.0
    %1311 = vmatpush1.msra.mxu0 0.0
    %1312 = vmatprep.subr.mxu0 0.0
    %1313 = vmatpush1.msra.mxu0 0.0
    %1314 = vmatprep.subr.mxu0 0.0
    %1315 = vmatpush1.msra.mxu0 0.0
    %1316 = vmatprep.subr.mxu0 0.0
    %1317 = vmatpush1.msra.mxu0 0.0
    %1318 = vmatprep.subr.mxu0 0.0
    %1319 = vmatpush1.msra.mxu0 0.0
    %1320 = vmatprep.subr.mxu0 0.0
    %1321 = vmatpush1.msra.mxu0 0.0
    %1322 = vmatprep.subr.mxu0 0.0
    %1323 = vmatpush1.msra.mxu0 0.0
    %1324 = vmatprep.subr.mxu0 0.0
    %1325 = vmatpush1.msra.mxu0 %v434
    %1326 = vmatprep.subr.mxu0 0.0
    %1327 = vmatpush1.msra.mxu0 %v429
    %1328 = vmatprep.subr.mxu0 0.0
    %1329 = vmatpush2.msra.mxu0 0.0
    %1330 = vmatprep.subr.mxu0 0.0
    %1331 = vmatpush2.msra.mxu0 0.0
    %1332 = vmatprep.subr.mxu0 0.0
    %1333 = vmatpush2.msra.mxu0 0.0
    %1334 = vmatprep.subr.mxu0 0.0
    %1335 = vmatpush2.msra.mxu0 0.0
    %1336 = vmatprep.subr.mxu0 0.0
    %1337 = vmatpush2.msra.mxu0 0.0
    %1338 = vmatprep.subr.mxu0 0.0
    %1339 = vmatpush2.msra.mxu0 0.0
    %1340 = vmatprep.subr.mxu0 0.0
    %1341 = vmatpush2.msra.mxu0 0.0
    %1342 = vmatprep.subr.mxu0 0.0
    %1343 = vmatpush2.msra.mxu0 0.0
    %1344 = vmatprep.subr.mxu0 0.0
    %1345 = vmatpush2.msra.mxu0 0.0
    %1346 = vmatprep.subr.mxu0 0.0
    %1347 = vmatpush2.msra.mxu0 0.0
    %1348 = vmatprep.subr.mxu0 0.0
    %1349 = vmatpush2.msra.mxu0 0.0
    %1350 = vmatprep.subr.mxu0 0.0
    %1351 = vmatpush2.msra.mxu0 0.0
    %1352 = vmatprep.subr.mxu0 0.0
    %1353 = vmatpush2.msra.mxu0 0.0
    %1354 = vmatprep.subr.mxu0 0.0
    %1355 = vmatpush2.msra.mxu0 0.0
    %1356 = vmatprep.subr.mxu0 0.0
    %1357 = vmatpush2.msra.mxu0 0.0
    %1358 = vmatprep.subr.mxu0 0.0
    %1359 = vmatpush2.msra.mxu0 0.0
    %1360 = vmatprep.mubr.f32.mxu0 0.0
    %1361 = vmatmul.mubr.f32.gmra.mxu0 %v1273
    %v1362 = vpop.f32.mrf.mxu0
    %v1363 = vadd.f32 0.0, %v1362
    %v1364 = vpop.f32.mrf.mxu0
    %1365 = vmatprep.mubr.f32.mxu0 0.0
    %1366 = vmatmul.mubr.f32.gmra.mxu0 %v1276
    %v1367 = vpop.f32.mrf.mxu0
    %v1368 = vadd.f32 0.0, %v1367
    %v1369 = vpop.f32.mrf.mxu0
    %1370 = vmatprep.mubr.f32.mxu0 0.0
    %1371 = vmatmul.mubr.f32.gmra.mxu0 %v1279
    %v1372 = vpop.f32.mrf.mxu0
    %v1373 = vadd.f32 0.0, %v1372
    %v1374 = vpop.f32.mrf.mxu0
    %1375 = vmatprep.mubr.f32.mxu0 0.0
    %1376 = vmatmul.mubr.f32.gmra.mxu0 %v1282
    %v1377 = vpop.f32.mrf.mxu0
    %v1378 = vadd.f32 0.0, %v1377
    %v1379 = vpop.f32.mrf.mxu0
    %1380 = vmatprep.mubr.f32.mxu0 0.0
    %1381 = vmatmul.mubr.f32.gmra.mxu0 %v1285
    %v1382 = vpop.f32.mrf.mxu0
    %v1383 = vadd.f32 0.0, %v1382
    %v1384 = vpop.f32.mrf.mxu0
    %1385 = vmatprep.mubr.f32.mxu0 0.0
    %1386 = vmatmul.mubr.f32.gmra.mxu0 %v1288
    %v1387 = vpop.f32.mrf.mxu0
    %v1388 = vadd.f32 0.0, %v1387
    %v1389 = vpop.f32.mrf.mxu0
    %1390 = vmatprep.mubr.f32.mxu0 0.0
    %1391 = vmatmul.mubr.f32.gmra.mxu0 %v1291
    %v1392 = vpop.f32.mrf.mxu0
    %v1393 = vadd.f32 0.0, %v1392
    %v1394 = vpop.f32.mrf.mxu0
    %1395 = vmatprep.mubr.f32.mxu0 0.0
    %1396 = vmatmul.mubr.f32.gmra.mxu0 %v1294
    %v1397 = vpop.f32.mrf.mxu0
    %v1398 = vadd.f32 0.0, %v1397
    %v1399 = vpop.f32.mrf.mxu0
    %1400 = vdwg.mxu0
    %v1401 = vmul.f32 %v1363, %v61
    %v1402 = vmul.f32 %v1368, %v62
    %v1403 = vmul.f32 %v1373, %v63
    %v1404 = vmul.f32 %v1378, %v64
    %v1405 = vmul.f32 %v1383, %v65
    %v1406 = vmul.f32 %v1388, %v66
    %v1407 = vmul.f32 %v1393, %v67
    %v1408 = vmul.f32 %v1398, %v68
    %v1409 = vsel %vm264, %v1401, 0.0
    %1410 = vadd.xlane.f32.xlu0 %v1409
    %v1411 = vpop.xlane.xlu0 %1410
    %v1412 = vsel %vm264, %v1402, 0.0
    %1413 = vadd.xlane.f32.xlu0 %v1412
    %v1414 = vpop.xlane.xlu0 %1413
    %v1415 = vsel %vm264, %v1403, 0.0
    %1416 = vadd.xlane.f32.xlu0 %v1415
    %v1417 = vpop.xlane.xlu0 %1416
    %v1418 = vsel %vm264, %v1404, 0.0
    %1419 = vadd.xlane.f32.xlu0 %v1418
    %v1420 = vpop.xlane.xlu0 %1419
    %v1421 = vsel %vm264, %v1405, 0.0
    %1422 = vadd.xlane.f32.xlu0 %v1421
    %v1423 = vpop.xlane.xlu0 %1422
    %v1424 = vsel %vm264, %v1406, 0.0
    %1425 = vadd.xlane.f32.xlu0 %v1424
    %v1426 = vpop.xlane.xlu0 %1425
    %v1427 = vsel %vm264, %v1407, 0.0
    %1428 = vadd.xlane.f32.xlu0 %v1427
    %v1429 = vpop.xlane.xlu0 %1428
    %v1430 = vsel %vm264, %v1408, 0.0
    %1431 = vadd.xlane.f32.xlu0 %v1430
    %v1432 = vpop.xlane.xlu0 %1431
    %v1433 = vmul.f32 %v1411, 0.0625
    %v1434 = vmul.f32 %v1414, 0.0625
    %v1435 = vmul.f32 %v1417, 0.0625
    %v1436 = vmul.f32 %v1420, 0.0625
    %v1437 = vmul.f32 %v1423, 0.0625
    %v1438 = vmul.f32 %v1426, 0.0625
    %v1439 = vmul.f32 %v1429, 0.0625
    %v1440 = vmul.f32 %v1432, 0.0625
    %v1441 = vsub.f32 %v1401, %v1433
    %v1442 = vsub.f32 %v1402, %v1434
    %v1443 = vsub.f32 %v1403, %v1435
    %v1444 = vsub.f32 %v1404, %v1436
    %v1445 = vsub.f32 %v1405, %v1437
    %v1446 = vsub.f32 %v1406, %v1438
    %v1447 = vsub.f32 %v1407, %v1439
    %v1448 = vsub.f32 %v1408, %v1440
    %v1449 = vmul.f32 %v1441, %v61
    %v1450 = vmul.f32 %v1442, %v62
    %v1451 = vmul.f32 %v1443, %v63
    %v1452 = vmul.f32 %v1444, %v64
    %v1453 = vmul.f32 %v1445, %v65
    %v1454 = vmul.f32 %v1446, %v66
    %v1455 = vmul.f32 %v1447, %v67
    %v1456 = vmul.f32 %v1448, %v68
    %v1457 = vmul.f32 %v1449, %v1449
    %v1458 = vmul.f32 %v1450, %v1450
    %v1459 = vmul.f32 %v1451, %v1451
    %v1460 = vmul.f32 %v1452, %v1452
    %v1461 = vmul.f32 %v1453, %v1453
    %v1462 = vmul.f32 %v1454, %v1454
    %v1463 = vmul.f32 %v1455, %v1455
    %v1464 = vmul.f32 %v1456, %v1456
    %v1465 = vsel %vm264, %v1457, 0.0
    %1466 = vadd.xlane.f32.xlu0 %v1465
    %v1467 = vpop.xlane.xlu0 %1466
    %v1468 = vsel %vm264, %v1458, 0.0
    %1469 = vadd.xlane.f32.xlu0 %v1468
    %v1470 = vpop.xlane.xlu0 %1469
    %v1471 = vsel %vm264, %v1459, 0.0
    %1472 = vadd.xlane.f32.xlu0 %v1471
    %v1473 = vpop.xlane.xlu0 %1472
    %v1474 = vsel %vm264, %v1460, 0.0
    %1475 = vadd.xlane.f32.xlu0 %v1474
    %v1476 = vpop.xlane.xlu0 %1475
    %v1477 = vsel %vm264, %v1461, 0.0
    %1478 = vadd.xlane.f32.xlu0 %v1477
    %v1479 = vpop.xlane.xlu0 %1478
    %v1480 = vsel %vm264, %v1462, 0.0
    %1481 = vadd.xlane.f32.xlu0 %v1480
    %v1482 = vpop.xlane.xlu0 %1481
    %v1483 = vsel %vm264, %v1463, 0.0
    %1484 = vadd.xlane.f32.xlu0 %v1483
    %v1485 = vpop.xlane.xlu0 %1484
    %v1486 = vsel %vm264, %v1464, 0.0
    %1487 = vadd.xlane.f32.xlu0 %v1486
    %v1488 = vpop.xlane.xlu0 %1487
    %v1489 = vmul.f32 %v1467, 0.0625
    %v1490 = vmul.f32 %v1470, 0.0625
    %v1491 = vmul.f32 %v1473, 0.0625
    %v1492 = vmul.f32 %v1476, 0.0625
    %v1493 = vmul.f32 %v1479, 0.0625
    %v1494 = vmul.f32 %v1482, 0.0625
    %v1495 = vmul.f32 %v1485, 0.0625
    %v1496 = vmul.f32 %v1488, 0.0625
    %v1497 = vadd.f32 %v1489, 1e-05
    %v1498 = vadd.f32 %v1490, 1e-05
    %v1499 = vadd.f32 %v1491, 1e-05
    %v1500 = vadd.f32 %v1492, 1e-05
    %v1501 = vadd.f32 %v1493, 1e-05
    %v1502 = vadd.f32 %v1494, 1e-05
    %v1503 = vadd.f32 %v1495, 1e-05
    %v1504 = vadd.f32 %v1496, 1e-05
    %v1505 = vrsqrt.pop %v1497
    %v1506 = vrsqrt.pop %v1498
    %v1507 = vrsqrt.pop %v1499
    %v1508 = vrsqrt.pop %v1500
    %v1509 = vrsqrt.pop %v1501
    %v1510 = vrsqrt.pop %v1502
    %v1511 = vrsqrt.pop %v1503
    %v1512 = vrsqrt.pop %v1504
    %v1513 = vmul.f32 %v1449, %v1505
    %v1514 = vmul.f32 %v1450, %v1506
    %v1515 = vmul.f32 %v1451, %v1507
    %v1516 = vmul.f32 %v1452, %v1508
    %v1517 = vmul.f32 %v1453, %v1509
    %v1518 = vmul.f32 %v1454, %v1510
    %v1519 = vmul.f32 %v1455, %v1511
    %v1520 = vmul.f32 %v1456, %v1512
    %v1521 = vadd.f32 %v1513, %v1515
    %v1522 = vadd.f32 %v1514, %v1516
    %v1523 = vadd.f32 %v1521, %v1517
    %v1524 = vadd.f32 %v1522, %v1518
    %v1525 = vadd.f32 %v1523, %v1519
    %v1526 = vadd.f32 %v1524, %v1520
    %v1527 = vlaneseq
    %v1528 = vshrl.u32 %v1527, 7
    %v1529 = vsub.s32 0, %v1528
    %v1530 = vrot.slane %v71, %v1529
    %v1531 = vmul.f32 %v1525, %v1530
    %v1532 = vmul.f32 %v1526, %v1530
    %v1533 = vlaneseq
    %v1534 = vshrl.u32 %v1533, 7
    %v1535 = vsub.s32 0, %v1534
    %v1536 = vrot.slane %v72, %v1535
    %v1537 = vmul.f32 %v1536, %v246
    %v1538 = vmul.f32 %v1536, %v247
    %v1539 = vadd.f32 %v1531, %v1537
    %v1540 = vadd.f32 %v1532, %v1538
    %v1541 = vxor.u32 %v179, 2147483648
    %v1542 = vxor.u32 %v184, 2147483648
    %v1543 = vmul.f32 %v1541, 1.442695
    %v1544 = vpow.pop %v1543
    %v1545 = vmul.f32 %v1542, 1.442695
    %v1546 = vpow.pop %v1545
    %v1547 = vadd.f32 %v1544, 1.0
    %v1548 = vadd.f32 %v1546, 1.0
    %v1549 = vrcp.pop %v1547
    %v1550 = vmul.f32 1.0, %v1549
    %v1551 = vrcp.pop %v1548
    %v1552 = vmul.f32 1.0, %v1551
    %v1553 = vmul.f32 %v179, %v1550
    %v1554 = vmul.f32 %v184, %v1552
    %1557 = vrot.lane.b32.xlu0 %v1553, 64
    %v1558 = vpop.permute.xlu0 %1557
    %1559 = vrot.lane.b32.xlu0 %v1554, 64
    %v1560 = vpop.permute.xlu0 %1559
    %v1563 = vmul.f32 %v1539, %v1558
    %v1564 = vmul.f32 %v1540, %v1560
    %v1565 = vld [vmem:[%s6] sm:$0xff]
    %v1566 = vld [vmem:[%s6 + $0x8] sm:$0xff]
    %v1567 = vld [vmem:[%s6 + $0x10] sm:$0xff]
    %v1568 = vld [vmem:[%s6 + $0x18] sm:$0xff]
    %v1569 = vld [vmem:[%s6 + $0x20] sm:$0xff]
    %v1570 = vld [vmem:[%s6 + $0x28] sm:$0xff]
    %v1571 = vld [vmem:[%s6 + $0x30] sm:$0xff]
    %v1572 = vld [vmem:[%s6 + $0x38] sm:$0xff]
    %v1574 = vsel %vm264, %v1563, 0
    %v1577 = vsel %vm264, %v1564, 0
    %1579 = vmatprep.subr.mxu0 0.0
    %1580 = vmatpush1.msra.mxu0 0.0
    %1581 = vmatprep.subr.mxu0 0.0
    %1582 = vmatpush1.msra.mxu0 0.0
    %1583 = vmatprep.subr.mxu0 0.0
    %1584 = vmatpush1.msra.mxu0 0.0
    %1585 = vmatprep.subr.mxu0 0.0
    %1586 = vmatpush1.msra.mxu0 0.0
    %1587 = vmatprep.subr.mxu0 0.0
    %1588 = vmatpush1.msra.mxu0 0.0
    %1589 = vmatprep.subr.mxu0 0.0
    %1590 = vmatpush1.msra.mxu0 0.0
    %1591 = vmatprep.subr.mxu0 0.0
    %1592 = vmatpush1.msra.mxu0 0.0
    %1593 = vmatprep.subr.mxu0 0.0
    %1594 = vmatpush1.msra.mxu0 0.0
    %1595 = vmatprep.subr.mxu0 0.0
    %1596 = vmatpush1.msra.mxu0 %v1572
    %1597 = vmatprep.subr.mxu0 0.0
    %1598 = vmatpush1.msra.mxu0 %v1571
    %1599 = vmatprep.subr.mxu0 0.0
    %1600 = vmatpush1.msra.mxu0 %v1570
    %1601 = vmatprep.subr.mxu0 0.0
    %1602 = vmatpush1.msra.mxu0 %v1569
    %1603 = vmatprep.subr.mxu0 0.0
    %1604 = vmatpush1.msra.mxu0 %v1568
    %1605 = vmatprep.subr.mxu0 0.0
    %1606 = vmatpush1.msra.mxu0 %v1567
    %1607 = vmatprep.subr.mxu0 0.0
    %1608 = vmatpush1.msra.mxu0 %v1566
    %1609 = vmatprep.subr.mxu0 0.0
    %1610 = vmatpush1.msra.mxu0 %v1565
    %1611 = vmatprep.subr.mxu0 0.0
    %1612 = vmatpush2.msra.mxu0 0.0
    %1613 = vmatprep.subr.mxu0 0.0
    %1614 = vmatpush2.msra.mxu0 0.0
    %1615 = vmatprep.subr.mxu0 0.0
    %1616 = vmatpush2.msra.mxu0 0.0
    %1617 = vmatprep.subr.mxu0 0.0
    %1618 = vmatpush2.msra.mxu0 0.0
    %1619 = vmatprep.subr.mxu0 0.0
    %1620 = vmatpush2.msra.mxu0 0.0
    %1621 = vmatprep.subr.mxu0 0.0
    %1622 = vmatpush2.msra.mxu0 0.0
    %1623 = vmatprep.subr.mxu0 0.0
    %1624 = vmatpush2.msra.mxu0 0.0
    %1625 = vmatprep.subr.mxu0 0.0
    %1626 = vmatpush2.msra.mxu0 0.0
    %1627 = vmatprep.subr.mxu0 0.0
    %1628 = vmatpush2.msra.mxu0 0.0
    %1629 = vmatprep.subr.mxu0 0.0
    %1630 = vmatpush2.msra.mxu0 0.0
    %1631 = vmatprep.subr.mxu0 0.0
    %1632 = vmatpush2.msra.mxu0 0.0
    %1633 = vmatprep.subr.mxu0 0.0
    %1634 = vmatpush2.msra.mxu0 0.0
    %1635 = vmatprep.subr.mxu0 0.0
    %1636 = vmatpush2.msra.mxu0 0.0
    %1637 = vmatprep.subr.mxu0 0.0
    %1638 = vmatpush2.msra.mxu0 0.0
    %1639 = vmatprep.subr.mxu0 0.0
    %1640 = vmatpush2.msra.mxu0 0.0
    %1641 = vmatprep.subr.mxu0 0.0
    %1642 = vmatpush2.msra.mxu0 0.0
    %1643 = vmatprep.mubr.f32.mxu0 0.0
    %1644 = vmatmul.mubr.f32.gmra.mxu0 %v1574
    %v1645 = vpop.f32.mrf.mxu0
    %v1646 = vadd.f32 0.0, %v1645
    %v1647 = vpop.f32.mrf.mxu0
    %1648 = vmatprep.mubr.f32.mxu0 0.0
    %1649 = vmatmul.mubr.f32.gmra.mxu0 %v1577
    %v1650 = vpop.f32.mrf.mxu0
    %v1651 = vadd.f32 0.0, %v1650
    %v1652 = vpop.f32.mrf.mxu0
    %1653 = vdwg.mxu0
    %v1654 = vadd.f32 %v33, %v1646
    %v1655 = vadd.f32 %v34, %v1651
    %v1656 = vsel %vm74, %v1654, 0.0
    %1657 = vadd.xlane.f32.xlu0 %v1656
    %v1658 = vpop.xlane.xlu0 %1657
    %v1659 = vsel %vm74, %v1655, 0.0
    %1660 = vadd.xlane.f32.xlu0 %v1659
    %v1661 = vpop.xlane.xlu0 %1660
    %v1662 = vmul.f32 %v1658, %v81
    %v1663 = vmul.f32 %v1661, %v81
    %v1664 = vsub.f32 %v1654, %v1662
    %v1665 = vsub.f32 %v1655, %v1663
    %v1666 = vmul.f32 %v1664, %v1664
    %v1667 = vmul.f32 %v1665, %v1665
    %v1668 = vsel %vm74, %v1666, 0.0
    %1669 = vadd.xlane.f32.xlu0 %v1668
    %v1670 = vpop.xlane.xlu0 %1669
    %v1671 = vsel %vm74, %v1667, 0.0
    %1672 = vadd.xlane.f32.xlu0 %v1671
    %v1673 = vpop.xlane.xlu0 %1672
    %v1674 = vmul.f32 %v1670, %v81
    %v1675 = vmul.f32 %v1673, %v81
    %v1676 = vadd.f32 %v1674, 1e-05
    %v1677 = vadd.f32 %v1675, 1e-05
    %v1678 = vrsqrt.pop %v1676
    %v1679 = vrsqrt.pop %v1677
    %v1680 = vmul.f32 %v1664, %v1678
    %v1681 = vmul.f32 %v1665, %v1679
    %v1682 = vld [vmem:[%s7] sm:$0xff]
    %v1683 = vld [vmem:[%s7 + $0x8] sm:$0xff]
    %v1684 = vld [vmem:[%s7 + $0x10] sm:$0xff]
    %v1685 = vld [vmem:[%s7 + $0x18] sm:$0xff]
    %v1687 = vsel %vm74, %v1680, 0
    %v1690 = vsel %vm74, %v1681, 0
    %1692 = vmatprep.subr.mxu0 0.0
    %1693 = vmatpush1.msra.mxu0 0.0
    %1694 = vmatprep.subr.mxu0 0.0
    %1695 = vmatpush1.msra.mxu0 0.0
    %1696 = vmatprep.subr.mxu0 0.0
    %1697 = vmatpush1.msra.mxu0 0.0
    %1698 = vmatprep.subr.mxu0 0.0
    %1699 = vmatpush1.msra.mxu0 0.0
    %1700 = vmatprep.subr.mxu0 0.0
    %1701 = vmatpush1.msra.mxu0 0.0
    %1702 = vmatprep.subr.mxu0 0.0
    %1703 = vmatpush1.msra.mxu0 0.0
    %1704 = vmatprep.subr.mxu0 0.0
    %1705 = vmatpush1.msra.mxu0 0.0
    %1706 = vmatprep.subr.mxu0 0.0
    %1707 = vmatpush1.msra.mxu0 0.0
    %1708 = vmatprep.subr.mxu0 0.0
    %1709 = vmatpush1.msra.mxu0 0.0
    %1710 = vmatprep.subr.mxu0 0.0
    %1711 = vmatpush1.msra.mxu0 0.0
    %1712 = vmatprep.subr.mxu0 0.0
    %1713 = vmatpush1.msra.mxu0 0.0
    %1714 = vmatprep.subr.mxu0 0.0
    %1715 = vmatpush1.msra.mxu0 0.0
    %1716 = vmatprep.subr.mxu0 0.0
    %1717 = vmatpush1.msra.mxu0 %v1685
    %1718 = vmatprep.subr.mxu0 0.0
    %1719 = vmatpush1.msra.mxu0 %v1684
    %1720 = vmatprep.subr.mxu0 0.0
    %1721 = vmatpush1.msra.mxu0 %v1683
    %1722 = vmatprep.subr.mxu0 0.0
    %1723 = vmatpush1.msra.mxu0 %v1682
    %1724 = vmatprep.subr.mxu0 0.0
    %1725 = vmatpush2.msra.mxu0 0.0
    %1726 = vmatprep.subr.mxu0 0.0
    %1727 = vmatpush2.msra.mxu0 0.0
    %1728 = vmatprep.subr.mxu0 0.0
    %1729 = vmatpush2.msra.mxu0 0.0
    %1730 = vmatprep.subr.mxu0 0.0
    %1731 = vmatpush2.msra.mxu0 0.0
    %1732 = vmatprep.subr.mxu0 0.0
    %1733 = vmatpush2.msra.mxu0 0.0
    %1734 = vmatprep.subr.mxu0 0.0
    %1735 = vmatpush2.msra.mxu0 0.0
    %1736 = vmatprep.subr.mxu0 0.0
    %1737 = vmatpush2.msra.mxu0 0.0
    %1738 = vmatprep.subr.mxu0 0.0
    %1739 = vmatpush2.msra.mxu0 0.0
    %1740 = vmatprep.subr.mxu0 0.0
    %1741 = vmatpush2.msra.mxu0 0.0
    %1742 = vmatprep.subr.mxu0 0.0
    %1743 = vmatpush2.msra.mxu0 0.0
    %1744 = vmatprep.subr.mxu0 0.0
    %1745 = vmatpush2.msra.mxu0 0.0
    %1746 = vmatprep.subr.mxu0 0.0
    %1747 = vmatpush2.msra.mxu0 0.0
    %1748 = vmatprep.subr.mxu0 0.0
    %1749 = vmatpush2.msra.mxu0 0.0
    %1750 = vmatprep.subr.mxu0 0.0
    %1751 = vmatpush2.msra.mxu0 0.0
    %1752 = vmatprep.subr.mxu0 0.0
    %1753 = vmatpush2.msra.mxu0 0.0
    %1754 = vmatprep.subr.mxu0 0.0
    %1755 = vmatpush2.msra.mxu0 0.0
    %1756 = vmatprep.mubr.f32.mxu0 0.0
    %1757 = vmatmul.mubr.f32.gmra.mxu0 %v1687
    %v1758 = vpop.f32.mrf.mxu0
    %v1759 = vadd.f32 0.0, %v1758
    %v1760 = vpop.f32.mrf.mxu0
    %1761 = vmatprep.mubr.f32.mxu0 0.0
    %1762 = vmatmul.mubr.f32.gmra.mxu0 %v1690
    %v1763 = vpop.f32.mrf.mxu0
    %v1764 = vadd.f32 0.0, %v1763
    %v1765 = vpop.f32.mrf.mxu0
    %1766 = vdwg.mxu0
    %v1767 = vmul.f32 %v1759, 0.5
    %v1768 = vmul.f32 %v1764, 0.5
    %v1769 = vmul.f32 %v1759, 0.044715
    %v1770 = vmul.f32 %v1764, 0.044715
    %v1771 = vmul.f32 %v1769, %v1759
    %v1772 = vmul.f32 %v1770, %v1764
    %v1773 = vmul.f32 %v1771, %v1759
    %v1774 = vmul.f32 %v1772, %v1764
    %v1775 = vadd.f32 %v1759, %v1773
    %v1776 = vadd.f32 %v1764, %v1774
    %v1777 = vmul.f32 %v1775, 0.7978846
    %v1778 = vmul.f32 %v1776, 0.7978846
    %v1779 = vtanh.pop %v1777
    %v1780 = vtanh.pop %v1778
    %v1781 = vadd.f32 %v1779, 1.0
    %v1782 = vadd.f32 %v1780, 1.0
    %v1783 = vmul.f32 %v1767, %v1781
    %v1784 = vmul.f32 %v1768, %v1782
    %1787 = vrot.lane.b32.xlu0 %v1759, 64
    %v1788 = vpop.permute.xlu0 %1787
    %1789 = vrot.lane.b32.xlu0 %v1764, 64
    %v1790 = vpop.permute.xlu0 %1789
    %v1793 = vmul.f32 %v1783, %v1788
    %v1794 = vmul.f32 %v1784, %v1790
    %v1795 = vld [vmem:[%s8] sm:$0xff]
    %v1796 = vld [vmem:[%s8 + $0x8] sm:$0xff]
    %v1797 = vld [vmem:[%s8 + $0x10] sm:$0xff]
    %v1798 = vld [vmem:[%s8 + $0x18] sm:$0xff]
    %v1799 = vld [vmem:[%s8 + $0x20] sm:$0xff]
    %v1800 = vld [vmem:[%s8 + $0x28] sm:$0xff]
    %v1801 = vld [vmem:[%s8 + $0x30] sm:$0xff]
    %v1802 = vld [vmem:[%s8 + $0x38] sm:$0xff]
    %v1804 = vsel %vm264, %v1793, 0
    %v1807 = vsel %vm264, %v1794, 0
    %1809 = vmatprep.subr.mxu0 0.0
    %1810 = vmatpush1.msra.mxu0 0.0
    %1811 = vmatprep.subr.mxu0 0.0
    %1812 = vmatpush1.msra.mxu0 0.0
    %1813 = vmatprep.subr.mxu0 0.0
    %1814 = vmatpush1.msra.mxu0 0.0
    %1815 = vmatprep.subr.mxu0 0.0
    %1816 = vmatpush1.msra.mxu0 0.0
    %1817 = vmatprep.subr.mxu0 0.0
    %1818 = vmatpush1.msra.mxu0 0.0
    %1819 = vmatprep.subr.mxu0 0.0
    %1820 = vmatpush1.msra.mxu0 0.0
    %1821 = vmatprep.subr.mxu0 0.0
    %1822 = vmatpush1.msra.mxu0 0.0
    %1823 = vmatprep.subr.mxu0 0.0
    %1824 = vmatpush1.msra.mxu0 0.0
    %1825 = vmatprep.subr.mxu0 0.0
    %1826 = vmatpush1.msra.mxu0 %v1802
    %1827 = vmatprep.subr.mxu0 0.0
    %1828 = vmatpush1.msra.mxu0 %v1801
    %1829 = vmatprep.subr.mxu0 0.0
    %1830 = vmatpush1.msra.mxu0 %v1800
    %1831 = vmatprep.subr.mxu0 0.0
    %1832 = vmatpush1.msra.mxu0 %v1799
    %1833 = vmatprep.subr.mxu0 0.0
    %1834 = vmatpush1.msra.mxu0 %v1798
    %1835 = vmatprep.subr.mxu0 0.0
    %1836 = vmatpush1.msra.mxu0 %v1797
    %1837 = vmatprep.subr.mxu0 0.0
    %1838 = vmatpush1.msra.mxu0 %v1796
    %1839 = vmatprep.subr.mxu0 0.0
    %1840 = vmatpush1.msra.mxu0 %v1795
    %1841 = vmatprep.subr.mxu0 0.0
    %1842 = vmatpush2.msra.mxu0 0.0
    %1843 = vmatprep.subr.mxu0 0.0
    %1844 = vmatpush2.msra.mxu0 0.0
    %1845 = vmatprep.subr.mxu0 0.0
    %1846 = vmatpush2.msra.mxu0 0.0
    %1847 = vmatprep.subr.mxu0 0.0
    %1848 = vmatpush2.msra.mxu0 0.0
    %1849 = vmatprep.subr.mxu0 0.0
    %1850 = vmatpush2.msra.mxu0 0.0
    %1851 = vmatprep.subr.mxu0 0.0
    %1852 = vmatpush2.msra.mxu0 0.0
    %1853 = vmatprep.subr.mxu0 0.0
    %1854 = vmatpush2.msra.mxu0 0.0
    %1855 = vmatprep.subr.mxu0 0.0
    %1856 = vmatpush2.msra.mxu0 0.0
    %1857 = vmatprep.subr.mxu0 0.0
    %1858 = vmatpush2.msra.mxu0 0.0
    %1859 = vmatprep.subr.mxu0 0.0
    %1860 = vmatpush2.msra.mxu0 0.0
    %1861 = vmatprep.subr.mxu0 0.0
    %1862 = vmatpush2.msra.mxu0 0.0
    %1863 = vmatprep.subr.mxu0 0.0
    %1864 = vmatpush2.msra.mxu0 0.0
    %1865 = vmatprep.subr.mxu0 0.0
    %1866 = vmatpush2.msra.mxu0 0.0
    %1867 = vmatprep.subr.mxu0 0.0
    %1868 = vmatpush2.msra.mxu0 0.0
    %1869 = vmatprep.subr.mxu0 0.0
    %1870 = vmatpush2.msra.mxu0 0.0
    %1871 = vmatprep.subr.mxu0 0.0
    %1872 = vmatpush2.msra.mxu0 0.0
    %1873 = vmatprep.mubr.f32.mxu0 0.0
    %1874 = vmatmul.mubr.f32.gmra.mxu0 %v1804
    %v1875 = vpop.f32.mrf.mxu0
    %v1876 = vadd.f32 0.0, %v1875
    %v1877 = vpop.f32.mrf.mxu0
    %1878 = vmatprep.mubr.f32.mxu0 0.0
    %1879 = vmatmul.mubr.f32.gmra.mxu0 %v1807
    %v1880 = vpop.f32.mrf.mxu0
    %v1881 = vadd.f32 0.0, %v1880
    %v1882 = vpop.f32.mrf.mxu0
    %1883 = vdwg.mxu0
    %v1884 = vadd.f32 %v1654, %v1876
    %v1885 = vadd.f32 %v1655, %v1881
    %1886 = vst.msk [vmem:[#allocation2] sm:$0xff] %vm74, %v1884
    %1887 = vst.msk [vmem:[#allocation2 + $0x8] sm:$0xff] %vm74, %v1885
    // Predicated region
    $region38: #{tpu_custom_call.1} parent=1 // pred_check
      _
    $region39: #{tpu_custom_call.1} parent=1 // pred_check_branch
      %1889 = sbr.rel (0) target = $region41
    $region40: #{tpu_custom_call.1} parent=1 // pred_region
      %s1891 = ssub.s32 256, 256
      %1892 = vsyncadd [#allocation3], %s1891
      %s1893 = sshll.u32 [#allocation2], 4
      %s1894 = int_to_ptr.vmem [resolvable:$true] %s1893
      %1899 = dma.vmem_to_hbm [thread:$0]  %s1894, 256, %s9, [#allocation3], 128, 128, 8
    $region41: #{tpu_custom_call.1} parent=1 // pred_fallthru
      _
    // Predicated region
    $region42: #{tpu_custom_call.1} parent=1 // pred_check
      _
    $region43: #{tpu_custom_call.1} parent=1 // pred_check_branch
      %1901 = sbr.rel (0) target = $region45
    $region44: #{tpu_custom_call.1} parent=1 // pred_region
      %1902 = dma.done [#allocation3], 256
    $region45: #{tpu_custom_call.1} parent=1 // pred_fallthru
      _
    %1903 = vsyncpa [#allocation3], 1

</llo_original>
